<compile_context>
chip_gen: v7x
topology: tpu7x:2x2x1
jax: 0.10.0
libtpu: 0.0.40
codegen_flags: <defaults>
</compile_context>

<pallas_src>
import jax
import jax.numpy as jnp
from jax.experimental import pallas as pl
from jax.experimental.pallas import tpu as pltpu


def _round_up(x, m):
    return ((x + m - 1) // m) * m


# ----------------------------------------------------------------------------
# Fused Pallas kernel: L-layer LSTM over T timesteps + final Linear.
# Layer-outer / time-inner; fully unrolled at trace time (T, L small & static).
# ----------------------------------------------------------------------------
def _fused_lstm_fc_kernel(x_ref, wih0_ref, wih_ref, whh_ref, b_ref,
                          h0_ref, c0_ref, fcw_ref, fcb_ref,
                          out_ref, hn_ref, cn_ref):
    """All operands VMEM-resident.

    x_ref    : (T*Bp, D)        time-major input, batch zero-padded to Bp
    wih0_ref : (D, 4H)          layer-0 W_ih^T, gate columns [i,f,o,g]
    wih_ref  : (max(L-1,1), H, 4H)  layers>0 W_ih^T (dummy row if L == 1)
    whh_ref  : (L, H, 4H)       W_hh^T per layer, gate columns [i,f,o,g]
    b_ref    : (L, 1, 4H)       b_ih + b_hh per layer, reordered [i,f,o,g]
    h0_ref   : (L, Bp, H)       c0_ref : (L, Bp, H)
    fcw_ref  : (H, Op)          fc.weight^T zero-padded to Op lanes
    fcb_ref  : (1, Op)
    out_ref  : (Bp, Op)         fc(h_T of top layer)
    hn_ref   : (L, Bp, H)       cn_ref : (L, Bp, H)
    """
    TB, _ = x_ref.shape
    L, Bp, H = h0_ref.shape
    T = TB // Bp

    prev_seq = x_ref[...]                                   # (T*Bp, D) layer-0 input
    h = None
    for l in range(L):
        wih = wih0_ref[...] if l == 0 else wih_ref[l - 1]   # (in_l, 4H)
        whh = whh_ref[l]                                    # (H, 4H)

        # Whole-sequence input projection + bias fold: one batched MXU matmul
        # (off the recurrent critical path, M = T*Bp rows).
        gx = (jnp.dot(prev_seq, wih, preferred_element_type=jnp.float32)
              + b_ref[l])                                   # (T*Bp, 4H)

        h = h0_ref[l]                                       # (Bp, H)
        c = c0_ref[l]
        hs = []
        for t in range(T):
            # Recurrent part only: tiny h @ W_hh, then elementwise gate math.
            gates = gx[t * Bp:(t + 1) * Bp, :] + jnp.dot(
                h, whh, preferred_element_type=jnp.float32)  # (Bp, 4H)

            # Gate columns are packed [i, f, o, g]: one sigmoid over 3H lanes,
            # one tanh over H lanes (half the EUP work of the full 4H tile).
            sig = jax.nn.sigmoid(gates[:, :3 * H])
            g_g = jnp.tanh(gates[:, 3 * H:])
            i_g = sig[:, 0 * H:1 * H]
            f_g = sig[:, 1 * H:2 * H]
            o_g = sig[:, 2 * H:3 * H]

            c = f_g * c + i_g * g_g
            h = o_g * jnp.tanh(c)
            if l < L - 1:
                hs.append(h)

        hn_ref[l] = h
        cn_ref[l] = c
        if l < L - 1:
            # Hand the full hidden sequence to the next layer in vregs —
            # no VMEM scratch store/reload round trip.
            prev_seq = jnp.concatenate(hs, axis=0)          # (T*Bp, H)

    # Fused final Linear on the last hidden state of the top layer.
    out_ref[...] = (jnp.dot(h, fcw_ref[...], preferred_element_type=jnp.float32)
                    + fcb_ref[...])


# ----------------------------------------------------------------------------
# Wrapper around pallas_call (layout plumbing only)
# ----------------------------------------------------------------------------
def reinforce_lstm_forward(params, x, h0=None, c0=None):
    """x: (B, T, D) float32.  Returns (out (B,O), hn (L,B,H), cn (L,B,H))."""
    B, T, D = x.shape
    L = params["layer_dim"]
    H = params["hidden_dim"]
    O = params["output_dim"]
    assert D == params["input_dim"]
    Bp = _round_up(B, 8)                     # sublane-multiple batch
    Op = params["fc_w_pad"].shape[1]         # lane-multiple FC output

    if h0 is None or c0 is None:
        h0 = jnp.zeros((L, B, H), jnp.float32)
        c0 = jnp.zeros((L, B, H), jnp.float32)

    # Time-major, batch zero-padded to Bp, flattened to (T*Bp, D).
    x_tm = jnp.transpose(x, (1, 0, 2))                               # (T, B, D)
    x_p = (jnp.zeros((T, Bp, D), jnp.float32)
           .at[:, :B, :].set(x_tm)
           .reshape(T * Bp, D))
    h0_p = jnp.zeros((L, Bp, H), jnp.float32).at[:, :B, :].set(h0)
    c0_p = jnp.zeros((L, Bp, H), jnp.float32).at[:, :B, :].set(c0)

    out_p, hn_p, cn_p = pl.pallas_call(
        _fused_lstm_fc_kernel,
        out_shape=(
            jax.ShapeDtypeStruct((Bp, Op), jnp.float32),
            jax.ShapeDtypeStruct((L, Bp, H), jnp.float32),
            jax.ShapeDtypeStruct((L, Bp, H), jnp.float32),
        ),
        compiler_params=pltpu.CompilerParams(
            vmem_limit_bytes=32 * 1024 * 1024),
    )(x_p, params["wih0"], params["wih_rest"], params["whh"], params["bias"],
      h0_p, c0_p, params["fc_w_pad"], params["fc_b_pad"])

    return out_p[:B, :O], hn_p[:, :B, :], cn_p[:, :B, :]


# ----------------------------------------------------------------------------
# Parameters (torch-like shapes) + packed forms for the fused kernel
# ----------------------------------------------------------------------------
def init_params(key, input_dim, hidden_dim, layer_dim, output_dim):
    H = hidden_dim
    k = 1.0 / jnp.sqrt(H)

    raw = []
    for l in range(layer_dim):
        in_l = input_dim if l == 0 else H
        key, k1, k2, k3, k4 = jax.random.split(key, 5)
        raw.append({
            "w_ih": jax.random.uniform(k1, (4 * H, in_l), jnp.float32, -k, k),
            "w_hh": jax.random.uniform(k2, (4 * H, H), jnp.float32, -k, k),
            "b_ih": jax.random.uniform(k3, (4 * H,), jnp.float32, -k, k),
            "b_hh": jax.random.uniform(k4, (4 * H,), jnp.float32, -k, k),
        })
    key, k1, k2 = jax.random.split(key, 3)
    fc_w = jax.random.uniform(k1, (output_dim, H), jnp.float32, -k, k)
    fc_b = jax.random.uniform(k2, (output_dim,), jnp.float32, -k, k)

    # Reorder torch gate blocks [i, f, g, o] -> [i, f, o, g] so the kernel can
    # apply sigmoid to a contiguous 3H slab and tanh to the last H columns.
    def reorder(w):
        i, f, g, o = jnp.split(w, 4, axis=0)
        return jnp.concatenate([i, f, o, g], axis=0)

    wih_list = [reorder(lay["w_ih"]).T for lay in raw]               # (in_l, 4H)
    whh = jnp.stack([reorder(lay["w_hh"]).T for lay in raw])         # (L, H, 4H)
    bias = jnp.stack([reorder(lay["b_ih"] + lay["b_hh"])[None, :]
                      for lay in raw])                               # (L, 1, 4H)

    wih0 = wih_list[0]                                               # (D, 4H) true K
    if layer_dim > 1:
        wih_rest = jnp.stack(wih_list[1:])                           # (L-1, H, 4H)
    else:
        wih_rest = jnp.zeros((1, H, 4 * H), jnp.float32)             # unused dummy

    Op = _round_up(output_dim, 128)
    fc_w_pad = jnp.zeros((H, Op), jnp.float32).at[:, :output_dim].set(fc_w.T)
    fc_b_pad = jnp.zeros((1, Op), jnp.float32).at[:, :output_dim].set(fc_b[None, :])

    return {
        "input_dim": input_dim, "hidden_dim": H, "layer_dim": layer_dim,
        "output_dim": output_dim,
        "raw": raw, "raw_fc_w": fc_w, "raw_fc_b": fc_b,
        "wih0": wih0,                  # (D, 4H)
        "wih_rest": wih_rest,          # (max(L-1,1), H, 4H)
        "whh": whh,                    # (L, H, 4H)
        "bias": bias,                  # (L, 1, 4H)
        "fc_w_pad": fc_w_pad,          # (H, Op)
        "fc_b_pad": fc_b_pad,          # (1, Op)
    }


# ----------------------------------------------------------------------------
# Pure-JAX reference (matches PyTorch nn.LSTM + nn.Linear semantics)
# ----------------------------------------------------------------------------
def _reference_forward(params, x, h0=None, c0=None):
    B, T, D = x.shape
    L, H = params["layer_dim"], params["hidden_dim"]
    if h0 is None or c0 is None:
        h0 = jnp.zeros((L, B, H), jnp.float32)
        c0 = jnp.zeros((L, B, H), jnp.float32)
    layer_in = x
    hn, cn = [], []
    for l in range(L):
        lay = params["raw"][l]
        wih_t, whh_t = lay["w_ih"].T, lay["w_hh"].T
        bias = (lay["b_ih"] + lay["b_hh"])[None, :]
        h, c = h0[l], c0[l]
        outs = []
        for t in range(T):
            g = layer_in[:, t, :] @ wih_t + h @ whh_t + bias
            i = jax.nn.sigmoid(g[:, 0 * H:1 * H])
            f = jax.nn.sigmoid(g[:, 1 * H:2 * H])
            gg = jnp.tanh(g[:, 2 * H:3 * H])
            o = jax.nn.sigmoid(g[:, 3 * H:4 * H])
            c = f * c + i * gg
            h = o * jnp.tanh(c)
            outs.append(h)
        layer_in = jnp.stack(outs, axis=1)
        hn.append(h)
        cn.append(c)
    out = hn[-1] @ params["raw_fc_w"].T + params["raw_fc_b"][None, :]
    return out, jnp.stack(hn), jnp.stack(cn)


# ----------------------------------------------------------------------------
if __name__ == "__main__":
    input_dim, hidden_dim, layer_dim, output_dim, seq_len = 8, 32, 2, 4, 8
    batch = 2

    key = jax.random.PRNGKey(0)
    kp, kx = jax.random.split(key)
    params = init_params(kp, input_dim, hidden_dim, layer_dim, output_dim)
    x = jax.random.normal(kx, (batch, seq_len, input_dim), jnp.float32)

    out, hn, cn = reinforce_lstm_forward(params, x)
    jax.block_until_ready((out, hn, cn))

    # Sanity check against the pure-JAX reference.
    ro, rh, rc = _reference_forward(params, x)
    assert out.shape == (batch, output_dim)
    assert hn.shape == (layer_dim, batch, hidden_dim)
    assert cn.shape == (layer_dim, batch, hidden_dim)
    assert jnp.allclose(out, ro, atol=1e-4), "fc output mismatch"
    assert jnp.allclose(hn, rh, atol=1e-4), "hn mismatch"
    assert jnp.allclose(cn, rc, atol=1e-4), "cn mismatch"

    print("KERNEL_OK")
</pallas_src>

<mosaic_0001>
module attributes {stable_mosaic.version = 11 : i64} {
  func.func @_fused_lstm_fc_kernel(%arg0: memref<64x8xf32, #tpu.memory_space<vmem>>, %arg1: memref<8x128xf32, #tpu.memory_space<vmem>>, %arg2: memref<1x32x128xf32, #tpu.memory_space<vmem>>, %arg3: memref<2x32x128xf32, #tpu.memory_space<vmem>>, %arg4: memref<2x1x128xf32, #tpu.memory_space<vmem>>, %arg5: memref<2x8x32xf32, #tpu.memory_space<vmem>>, %arg6: memref<2x8x32xf32, #tpu.memory_space<vmem>>, %arg7: memref<32x128xf32, #tpu.memory_space<vmem>>, %arg8: memref<1x128xf32, #tpu.memory_space<vmem>>, %arg9: memref<8x128xf32, #tpu.memory_space<vmem>>, %arg10: memref<2x8x32xf32, #tpu.memory_space<vmem>>, %arg11: memref<2x8x32xf32, #tpu.memory_space<vmem>>) attributes {dimension_semantics = [], scalar_prefetch = 0 : i64, scratch_operands = 0 : i64, tpu.core_type = #tpu.core_type<tc>} {
    %c0 = arith.constant 0 : index
    %c0_0 = arith.constant 0 : index
    %0 = vector.load %arg0[%c0, %c0_0] : memref<64x8xf32, #tpu.memory_space<vmem>>, vector<64x8xf32>
    %c0_1 = arith.constant 0 : index
    %c0_2 = arith.constant 0 : index
    %1 = vector.load %arg1[%c0_1, %c0_2] : memref<8x128xf32, #tpu.memory_space<vmem>>, vector<8x128xf32>
    %c0_3 = arith.constant 0 : index
    %c0_4 = arith.constant 0 : index
    %c0_5 = arith.constant 0 : index
    %2 = vector.load %arg3[%c0_3, %c0_4, %c0_5] : memref<2x32x128xf32, #tpu.memory_space<vmem>>, vector<1x32x128xf32>
    %3 = vector.shape_cast %2 : vector<1x32x128xf32> to vector<32x128xf32>
    %cst = arith.constant dense<0.000000e+00> : vector<64x128xf32>
    %4 = tpu.matmul %0, %1, %cst {dimension_numbers = #tpu.dot_dimension_numbers<[1], [0], [0], [1], [0, 0, 1, 1], [], []>} : vector<64x8xf32>, vector<8x128xf32>, vector<64x128xf32> -> vector<64x128xf32>
    %c0_6 = arith.constant 0 : index
    %c0_7 = arith.constant 0 : index
    %c0_8 = arith.constant 0 : index
    %5 = vector.load %arg4[%c0_6, %c0_7, %c0_8] : memref<2x1x128xf32, #tpu.memory_space<vmem>>, vector<1x1x128xf32>
    %6 = vector.shape_cast %5 : vector<1x1x128xf32> to vector<1x128xf32>
    %7 = vector.broadcast %6 : vector<1x128xf32> to vector<64x128xf32>
    %8 = arith.addf %4, %7 : vector<64x128xf32>
    %c0_9 = arith.constant 0 : index
    %c0_10 = arith.constant 0 : index
    %c0_11 = arith.constant 0 : index
    %9 = vector.load %arg5[%c0_9, %c0_10, %c0_11] : memref<2x8x32xf32, #tpu.memory_space<vmem>>, vector<1x8x32xf32>
    %10 = vector.shape_cast %9 : vector<1x8x32xf32> to vector<8x32xf32>
    %c0_12 = arith.constant 0 : index
    %c0_13 = arith.constant 0 : index
    %c0_14 = arith.constant 0 : index
    %11 = vector.load %arg6[%c0_12, %c0_13, %c0_14] : memref<2x8x32xf32, #tpu.memory_space<vmem>>, vector<1x8x32xf32>
    %12 = vector.shape_cast %11 : vector<1x8x32xf32> to vector<8x32xf32>
    %13 = vector.extract_strided_slice %8 {offsets = [0, 0], sizes = [8, 128], strides = [1, 1]} : vector<64x128xf32> to vector<8x128xf32>
    %cst_15 = arith.constant dense<0.000000e+00> : vector<8x128xf32>
    %14 = tpu.matmul %10, %3, %cst_15 {dimension_numbers = #tpu.dot_dimension_numbers<[1], [0], [0], [1], [0, 0, 1, 1], [], []>} : vector<8x32xf32>, vector<32x128xf32>, vector<8x128xf32> -> vector<8x128xf32>
    %15 = arith.addf %13, %14 : vector<8x128xf32>
    %16 = vector.extract_strided_slice %15 {offsets = [0, 0], sizes = [8, 96], strides = [1, 1]} : vector<8x128xf32> to vector<8x96xf32>
    %17 = arith.negf %16 : vector<8x96xf32>
    %18 = math.exp %17 : vector<8x96xf32>
    %cst_16 = arith.constant 1.000000e+00 : f32
    %19 = vector.broadcast %cst_16 : f32 to vector<8x96xf32>
    %20 = arith.addf %19, %18 : vector<8x96xf32>
    %21 = arith.divf %19, %20 : vector<8x96xf32>
    %22 = vector.extract_strided_slice %15 {offsets = [0, 96], sizes = [8, 32], strides = [1, 1]} : vector<8x128xf32> to vector<8x32xf32>
    %23 = math.tanh %22 : vector<8x32xf32>
    %24 = vector.extract_strided_slice %21 {offsets = [0, 0], sizes = [8, 32], strides = [1, 1]} : vector<8x96xf32> to vector<8x32xf32>
    %25 = vector.extract_strided_slice %21 {offsets = [0, 32], sizes = [8, 32], strides = [1, 1]} : vector<8x96xf32> to vector<8x32xf32>
    %26 = vector.extract_strided_slice %21 {offsets = [0, 64], sizes = [8, 32], strides = [1, 1]} : vector<8x96xf32> to vector<8x32xf32>
    %27 = arith.mulf %25, %12 : vector<8x32xf32>
    %28 = arith.mulf %24, %23 : vector<8x32xf32>
    %29 = arith.addf %27, %28 : vector<8x32xf32>
    %30 = math.tanh %29 : vector<8x32xf32>
    %31 = arith.mulf %26, %30 : vector<8x32xf32>
    %32 = vector.extract_strided_slice %8 {offsets = [8, 0], sizes = [8, 128], strides = [1, 1]} : vector<64x128xf32> to vector<8x128xf32>
    %cst_17 = arith.constant dense<0.000000e+00> : vector<8x128xf32>
    %33 = tpu.matmul %31, %3, %cst_17 {dimension_numbers = #tpu.dot_dimension_numbers<[1], [0], [0], [1], [0, 0, 1, 1], [], []>} : vector<8x32xf32>, vector<32x128xf32>, vector<8x128xf32> -> vector<8x128xf32>
    %34 = arith.addf %32, %33 : vector<8x128xf32>
    %35 = vector.extract_strided_slice %34 {offsets = [0, 0], sizes = [8, 96], strides = [1, 1]} : vector<8x128xf32> to vector<8x96xf32>
    %36 = arith.negf %35 : vector<8x96xf32>
    %37 = math.exp %36 : vector<8x96xf32>
    %cst_18 = arith.constant 1.000000e+00 : f32
    %38 = vector.broadcast %cst_18 : f32 to vector<8x96xf32>
    %39 = arith.addf %38, %37 : vector<8x96xf32>
    %40 = arith.divf %38, %39 : vector<8x96xf32>
    %41 = vector.extract_strided_slice %34 {offsets = [0, 96], sizes = [8, 32], strides = [1, 1]} : vector<8x128xf32> to vector<8x32xf32>
    %42 = math.tanh %41 : vector<8x32xf32>
    %43 = vector.extract_strided_slice %40 {offsets = [0, 0], sizes = [8, 32], strides = [1, 1]} : vector<8x96xf32> to vector<8x32xf32>
    %44 = vector.extract_strided_slice %40 {offsets = [0, 32], sizes = [8, 32], strides = [1, 1]} : vector<8x96xf32> to vector<8x32xf32>
    %45 = vector.extract_strided_slice %40 {offsets = [0, 64], sizes = [8, 32], strides = [1, 1]} : vector<8x96xf32> to vector<8x32xf32>
    %46 = arith.mulf %44, %29 : vector<8x32xf32>
    %47 = arith.mulf %43, %42 : vector<8x32xf32>
    %48 = arith.addf %46, %47 : vector<8x32xf32>
    %49 = math.tanh %48 : vector<8x32xf32>
    %50 = arith.mulf %45, %49 : vector<8x32xf32>
    %51 = vector.extract_strided_slice %8 {offsets = [16, 0], sizes = [8, 128], strides = [1, 1]} : vector<64x128xf32> to vector<8x128xf32>
    %cst_19 = arith.constant dense<0.000000e+00> : vector<8x128xf32>
    %52 = tpu.matmul %50, %3, %cst_19 {dimension_numbers = #tpu.dot_dimension_numbers<[1], [0], [0], [1], [0, 0, 1, 1], [], []>} : vector<8x32xf32>, vector<32x128xf32>, vector<8x128xf32> -> vector<8x128xf32>
    %53 = arith.addf %51, %52 : vector<8x128xf32>
    %54 = vector.extract_strided_slice %53 {offsets = [0, 0], sizes = [8, 96], strides = [1, 1]} : vector<8x128xf32> to vector<8x96xf32>
    %55 = arith.negf %54 : vector<8x96xf32>
    %56 = math.exp %55 : vector<8x96xf32>
    %cst_20 = arith.constant 1.000000e+00 : f32
    %57 = vector.broadcast %cst_20 : f32 to vector<8x96xf32>
    %58 = arith.addf %57, %56 : vector<8x96xf32>
    %59 = arith.divf %57, %58 : vector<8x96xf32>
    %60 = vector.extract_strided_slice %53 {offsets = [0, 96], sizes = [8, 32], strides = [1, 1]} : vector<8x128xf32> to vector<8x32xf32>
    %61 = math.tanh %60 : vector<8x32xf32>
    %62 = vector.extract_strided_slice %59 {offsets = [0, 0], sizes = [8, 32], strides = [1, 1]} : vector<8x96xf32> to vector<8x32xf32>
    %63 = vector.extract_strided_slice %59 {offsets = [0, 32], sizes = [8, 32], strides = [1, 1]} : vector<8x96xf32> to vector<8x32xf32>
    %64 = vector.extract_strided_slice %59 {offsets = [0, 64], sizes = [8, 32], strides = [1, 1]} : vector<8x96xf32> to vector<8x32xf32>
    %65 = arith.mulf %63, %48 : vector<8x32xf32>
    %66 = arith.mulf %62, %61 : vector<8x32xf32>
    %67 = arith.addf %65, %66 : vector<8x32xf32>
    %68 = math.tanh %67 : vector<8x32xf32>
    %69 = arith.mulf %64, %68 : vector<8x32xf32>
    %70 = vector.extract_strided_slice %8 {offsets = [24, 0], sizes = [8, 128], strides = [1, 1]} : vector<64x128xf32> to vector<8x128xf32>
    %cst_21 = arith.constant dense<0.000000e+00> : vector<8x128xf32>
    %71 = tpu.matmul %69, %3, %cst_21 {dimension_numbers = #tpu.dot_dimension_numbers<[1], [0], [0], [1], [0, 0, 1, 1], [], []>} : vector<8x32xf32>, vector<32x128xf32>, vector<8x128xf32> -> vector<8x128xf32>
    %72 = arith.addf %70, %71 : vector<8x128xf32>
    %73 = vector.extract_strided_slice %72 {offsets = [0, 0], sizes = [8, 96], strides = [1, 1]} : vector<8x128xf32> to vector<8x96xf32>
    %74 = arith.negf %73 : vector<8x96xf32>
    %75 = math.exp %74 : vector<8x96xf32>
    %cst_22 = arith.constant 1.000000e+00 : f32
    %76 = vector.broadcast %cst_22 : f32 to vector<8x96xf32>
    %77 = arith.addf %76, %75 : vector<8x96xf32>
    %78 = arith.divf %76, %77 : vector<8x96xf32>
    %79 = vector.extract_strided_slice %72 {offsets = [0, 96], sizes = [8, 32], strides = [1, 1]} : vector<8x128xf32> to vector<8x32xf32>
    %80 = math.tanh %79 : vector<8x32xf32>
    %81 = vector.extract_strided_slice %78 {offsets = [0, 0], sizes = [8, 32], strides = [1, 1]} : vector<8x96xf32> to vector<8x32xf32>
    %82 = vector.extract_strided_slice %78 {offsets = [0, 32], sizes = [8, 32], strides = [1, 1]} : vector<8x96xf32> to vector<8x32xf32>
    %83 = vector.extract_strided_slice %78 {offsets = [0, 64], sizes = [8, 32], strides = [1, 1]} : vector<8x96xf32> to vector<8x32xf32>
    %84 = arith.mulf %82, %67 : vector<8x32xf32>
    %85 = arith.mulf %81, %80 : vector<8x32xf32>
    %86 = arith.addf %84, %85 : vector<8x32xf32>
    %87 = math.tanh %86 : vector<8x32xf32>
    %88 = arith.mulf %83, %87 : vector<8x32xf32>
    %89 = vector.extract_strided_slice %8 {offsets = [32, 0], sizes = [8, 128], strides = [1, 1]} : vector<64x128xf32> to vector<8x128xf32>
    %cst_23 = arith.constant dense<0.000000e+00> : vector<8x128xf32>
    %90 = tpu.matmul %88, %3, %cst_23 {dimension_numbers = #tpu.dot_dimension_numbers<[1], [0], [0], [1], [0, 0, 1, 1], [], []>} : vector<8x32xf32>, vector<32x128xf32>, vector<8x128xf32> -> vector<8x128xf32>
    %91 = arith.addf %89, %90 : vector<8x128xf32>
    %92 = vector.extract_strided_slice %91 {offsets = [0, 0], sizes = [8, 96], strides = [1, 1]} : vector<8x128xf32> to vector<8x96xf32>
    %93 = arith.negf %92 : vector<8x96xf32>
    %94 = math.exp %93 : vector<8x96xf32>
    %cst_24 = arith.constant 1.000000e+00 : f32
    %95 = vector.broadcast %cst_24 : f32 to vector<8x96xf32>
    %96 = arith.addf %95, %94 : vector<8x96xf32>
    %97 = arith.divf %95, %96 : vector<8x96xf32>
    %98 = vector.extract_strided_slice %91 {offsets = [0, 96], sizes = [8, 32], strides = [1, 1]} : vector<8x128xf32> to vector<8x32xf32>
    %99 = math.tanh %98 : vector<8x32xf32>
    %100 = vector.extract_strided_slice %97 {offsets = [0, 0], sizes = [8, 32], strides = [1, 1]} : vector<8x96xf32> to vector<8x32xf32>
    %101 = vector.extract_strided_slice %97 {offsets = [0, 32], sizes = [8, 32], strides = [1, 1]} : vector<8x96xf32> to vector<8x32xf32>
    %102 = vector.extract_strided_slice %97 {offsets = [0, 64], sizes = [8, 32], strides = [1, 1]} : vector<8x96xf32> to vector<8x32xf32>
    %103 = arith.mulf %101, %86 : vector<8x32xf32>
    %104 = arith.mulf %100, %99 : vector<8x32xf32>
    %105 = arith.addf %103, %104 : vector<8x32xf32>
    %106 = math.tanh %105 : vector<8x32xf32>
    %107 = arith.mulf %102, %106 : vector<8x32xf32>
    %108 = vector.extract_strided_slice %8 {offsets = [40, 0], sizes = [8, 128], strides = [1, 1]} : vector<64x128xf32> to vector<8x128xf32>
    %cst_25 = arith.constant dense<0.000000e+00> : vector<8x128xf32>
    %109 = tpu.matmul %107, %3, %cst_25 {dimension_numbers = #tpu.dot_dimension_numbers<[1], [0], [0], [1], [0, 0, 1, 1], [], []>} : vector<8x32xf32>, vector<32x128xf32>, vector<8x128xf32> -> vector<8x128xf32>
    %110 = arith.addf %108, %109 : vector<8x128xf32>
    %111 = vector.extract_strided_slice %110 {offsets = [0, 0], sizes = [8, 96], strides = [1, 1]} : vector<8x128xf32> to vector<8x96xf32>
    %112 = arith.negf %111 : vector<8x96xf32>
    %113 = math.exp %112 : vector<8x96xf32>
    %cst_26 = arith.constant 1.000000e+00 : f32
    %114 = vector.broadcast %cst_26 : f32 to vector<8x96xf32>
    %115 = arith.addf %114, %113 : vector<8x96xf32>
    %116 = arith.divf %114, %115 : vector<8x96xf32>
    %117 = vector.extract_strided_slice %110 {offsets = [0, 96], sizes = [8, 32], strides = [1, 1]} : vector<8x128xf32> to vector<8x32xf32>
    %118 = math.tanh %117 : vector<8x32xf32>
    %119 = vector.extract_strided_slice %116 {offsets = [0, 0], sizes = [8, 32], strides = [1, 1]} : vector<8x96xf32> to vector<8x32xf32>
    %120 = vector.extract_strided_slice %116 {offsets = [0, 32], sizes = [8, 32], strides = [1, 1]} : vector<8x96xf32> to vector<8x32xf32>
    %121 = vector.extract_strided_slice %116 {offsets = [0, 64], sizes = [8, 32], strides = [1, 1]} : vector<8x96xf32> to vector<8x32xf32>
    %122 = arith.mulf %120, %105 : vector<8x32xf32>
    %123 = arith.mulf %119, %118 : vector<8x32xf32>
    %124 = arith.addf %122, %123 : vector<8x32xf32>
    %125 = math.tanh %124 : vector<8x32xf32>
    %126 = arith.mulf %121, %125 : vector<8x32xf32>
    %127 = vector.extract_strided_slice %8 {offsets = [48, 0], sizes = [8, 128], strides = [1, 1]} : vector<64x128xf32> to vector<8x128xf32>
    %cst_27 = arith.constant dense<0.000000e+00> : vector<8x128xf32>
    %128 = tpu.matmul %126, %3, %cst_27 {dimension_numbers = #tpu.dot_dimension_numbers<[1], [0], [0], [1], [0, 0, 1, 1], [], []>} : vector<8x32xf32>, vector<32x128xf32>, vector<8x128xf32> -> vector<8x128xf32>
    %129 = arith.addf %127, %128 : vector<8x128xf32>
    %130 = vector.extract_strided_slice %129 {offsets = [0, 0], sizes = [8, 96], strides = [1, 1]} : vector<8x128xf32> to vector<8x96xf32>
    %131 = arith.negf %130 : vector<8x96xf32>
    %132 = math.exp %131 : vector<8x96xf32>
    %cst_28 = arith.constant 1.000000e+00 : f32
    %133 = vector.broadcast %cst_28 : f32 to vector<8x96xf32>
    %134 = arith.addf %133, %132 : vector<8x96xf32>
    %135 = arith.divf %133, %134 : vector<8x96xf32>
    %136 = vector.extract_strided_slice %129 {offsets = [0, 96], sizes = [8, 32], strides = [1, 1]} : vector<8x128xf32> to vector<8x32xf32>
    %137 = math.tanh %136 : vector<8x32xf32>
    %138 = vector.extract_strided_slice %135 {offsets = [0, 0], sizes = [8, 32], strides = [1, 1]} : vector<8x96xf32> to vector<8x32xf32>
    %139 = vector.extract_strided_slice %135 {offsets = [0, 32], sizes = [8, 32], strides = [1, 1]} : vector<8x96xf32> to vector<8x32xf32>
    %140 = vector.extract_strided_slice %135 {offsets = [0, 64], sizes = [8, 32], strides = [1, 1]} : vector<8x96xf32> to vector<8x32xf32>
    %141 = arith.mulf %139, %124 : vector<8x32xf32>
    %142 = arith.mulf %138, %137 : vector<8x32xf32>
    %143 = arith.addf %141, %142 : vector<8x32xf32>
    %144 = math.tanh %143 : vector<8x32xf32>
    %145 = arith.mulf %140, %144 : vector<8x32xf32>
    %146 = vector.extract_strided_slice %8 {offsets = [56, 0], sizes = [8, 128], strides = [1, 1]} : vector<64x128xf32> to vector<8x128xf32>
    %cst_29 = arith.constant dense<0.000000e+00> : vector<8x128xf32>
    %147 = tpu.matmul %145, %3, %cst_29 {dimension_numbers = #tpu.dot_dimension_numbers<[1], [0], [0], [1], [0, 0, 1, 1], [], []>} : vector<8x32xf32>, vector<32x128xf32>, vector<8x128xf32> -> vector<8x128xf32>
    %148 = arith.addf %146, %147 : vector<8x128xf32>
    %149 = vector.extract_strided_slice %148 {offsets = [0, 0], sizes = [8, 96], strides = [1, 1]} : vector<8x128xf32> to vector<8x96xf32>
    %150 = arith.negf %149 : vector<8x96xf32>
    %151 = math.exp %150 : vector<8x96xf32>
    %cst_30 = arith.constant 1.000000e+00 : f32
    %152 = vector.broadcast %cst_30 : f32 to vector<8x96xf32>
    %153 = arith.addf %152, %151 : vector<8x96xf32>
    %154 = arith.divf %152, %153 : vector<8x96xf32>
    %155 = vector.extract_strided_slice %148 {offsets = [0, 96], sizes = [8, 32], strides = [1, 1]} : vector<8x128xf32> to vector<8x32xf32>
    %156 = math.tanh %155 : vector<8x32xf32>
    %157 = vector.extract_strided_slice %154 {offsets = [0, 0], sizes = [8, 32], strides = [1, 1]} : vector<8x96xf32> to vector<8x32xf32>
    %158 = vector.extract_strided_slice %154 {offsets = [0, 32], sizes = [8, 32], strides = [1, 1]} : vector<8x96xf32> to vector<8x32xf32>
    %159 = vector.extract_strided_slice %154 {offsets = [0, 64], sizes = [8, 32], strides = [1, 1]} : vector<8x96xf32> to vector<8x32xf32>
    %160 = arith.mulf %158, %143 : vector<8x32xf32>
    %161 = arith.mulf %157, %156 : vector<8x32xf32>
    %162 = arith.addf %160, %161 : vector<8x32xf32>
    %163 = math.tanh %162 : vector<8x32xf32>
    %164 = arith.mulf %159, %163 : vector<8x32xf32>
    %c0_31 = arith.constant 0 : index
    %c0_32 = arith.constant 0 : index
    %c0_33 = arith.constant 0 : index
    %165 = vector.load %arg10[%c0_31, %c0_32, %c0_33] : memref<2x8x32xf32, #tpu.memory_space<vmem>>, vector<1x8x32xf32>
    %166 = vector.shape_cast %165 : vector<1x8x32xf32> to vector<8x32xf32>
    %167 = vector.shape_cast %164 : vector<8x32xf32> to vector<1x8x32xf32>
    tpu.vector_store %arg10[%c0_31, %c0_32, %c0_33], %167 {strides = array<i32>} : memref<2x8x32xf32, #tpu.memory_space<vmem>>, vector<1x8x32xf32>,
    %c0_34 = arith.constant 0 : index
    %c0_35 = arith.constant 0 : index
    %c0_36 = arith.constant 0 : index
    %168 = vector.load %arg11[%c0_34, %c0_35, %c0_36] : memref<2x8x32xf32, #tpu.memory_space<vmem>>, vector<1x8x32xf32>
    %169 = vector.shape_cast %168 : vector<1x8x32xf32> to vector<8x32xf32>
    %170 = vector.shape_cast %162 : vector<8x32xf32> to vector<1x8x32xf32>
    tpu.vector_store %arg11[%c0_34, %c0_35, %c0_36], %170 {strides = array<i32>} : memref<2x8x32xf32, #tpu.memory_space<vmem>>, vector<1x8x32xf32>,
    %171 = tpu.concatenate %31, %50, %69, %88, %107, %126, %145, %164 in 0 : vector<8x32xf32>, vector<8x32xf32>, vector<8x32xf32>, vector<8x32xf32>, vector<8x32xf32>, vector<8x32xf32>, vector<8x32xf32>, vector<8x32xf32> -> vector<64x32xf32>
    %c0_37 = arith.constant 0 : index
    %c0_38 = arith.constant 0 : index
    %c0_39 = arith.constant 0 : index
    %172 = vector.load %arg2[%c0_37, %c0_38, %c0_39] : memref<1x32x128xf32, #tpu.memory_space<vmem>>, vector<1x32x128xf32>
    %173 = vector.shape_cast %172 : vector<1x32x128xf32> to vector<32x128xf32>
    %c1 = arith.constant 1 : index
    %c0_40 = arith.constant 0 : index
    %c0_41 = arith.constant 0 : index
    %174 = vector.load %arg3[%c1, %c0_40, %c0_41] : memref<2x32x128xf32, #tpu.memory_space<vmem>>, vector<1x32x128xf32>
    %175 = vector.shape_cast %174 : vector<1x32x128xf32> to vector<32x128xf32>
    %cst_42 = arith.constant dense<0.000000e+00> : vector<64x128xf32>
    %176 = tpu.matmul %171, %173, %cst_42 {dimension_numbers = #tpu.dot_dimension_numbers<[1], [0], [0], [1], [0, 0, 1, 1], [], []>} : vector<64x32xf32>, vector<32x128xf32>, vector<64x128xf32> -> vector<64x128xf32>
    %c1_43 = arith.constant 1 : index
    %c0_44 = arith.constant 0 : index
    %c0_45 = arith.constant 0 : index
    %177 = vector.load %arg4[%c1_43, %c0_44, %c0_45] : memref<2x1x128xf32, #tpu.memory_space<vmem>>, vector<1x1x128xf32>
    %178 = vector.shape_cast %177 : vector<1x1x128xf32> to vector<1x128xf32>
    %179 = vector.broadcast %178 : vector<1x128xf32> to vector<64x128xf32>
    %180 = arith.addf %176, %179 : vector<64x128xf32>
    %c1_46 = arith.constant 1 : index
    %c0_47 = arith.constant 0 : index
    %c0_48 = arith.constant 0 : index
    %181 = vector.load %arg5[%c1_46, %c0_47, %c0_48] : memref<2x8x32xf32, #tpu.memory_space<vmem>>, vector<1x8x32xf32>
    %182 = vector.shape_cast %181 : vector<1x8x32xf32> to vector<8x32xf32>
    %c1_49 = arith.constant 1 : index
    %c0_50 = arith.constant 0 : index
    %c0_51 = arith.constant 0 : index
    %183 = vector.load %arg6[%c1_49, %c0_50, %c0_51] : memref<2x8x32xf32, #tpu.memory_space<vmem>>, vector<1x8x32xf32>
    %184 = vector.shape_cast %183 : vector<1x8x32xf32> to vector<8x32xf32>
    %185 = vector.extract_strided_slice %180 {offsets = [0, 0], sizes = [8, 128], strides = [1, 1]} : vector<64x128xf32> to vector<8x128xf32>
    %cst_52 = arith.constant dense<0.000000e+00> : vector<8x128xf32>
    %186 = tpu.matmul %182, %175, %cst_52 {dimension_numbers = #tpu.dot_dimension_numbers<[1], [0], [0], [1], [0, 0, 1, 1], [], []>} : vector<8x32xf32>, vector<32x128xf32>, vector<8x128xf32> -> vector<8x128xf32>
    %187 = arith.addf %185, %186 : vector<8x128xf32>
    %188 = vector.extract_strided_slice %187 {offsets = [0, 0], sizes = [8, 96], strides = [1, 1]} : vector<8x128xf32> to vector<8x96xf32>
    %189 = arith.negf %188 : vector<8x96xf32>
    %190 = math.exp %189 : vector<8x96xf32>
    %cst_53 = arith.constant 1.000000e+00 : f32
    %191 = vector.broadcast %cst_53 : f32 to vector<8x96xf32>
    %192 = arith.addf %191, %190 : vector<8x96xf32>
    %193 = arith.divf %191, %192 : vector<8x96xf32>
    %194 = vector.extract_strided_slice %187 {offsets = [0, 96], sizes = [8, 32], strides = [1, 1]} : vector<8x128xf32> to vector<8x32xf32>
    %195 = math.tanh %194 : vector<8x32xf32>
    %196 = vector.extract_strided_slice %193 {offsets = [0, 0], sizes = [8, 32], strides = [1, 1]} : vector<8x96xf32> to vector<8x32xf32>
    %197 = vector.extract_strided_slice %193 {offsets = [0, 32], sizes = [8, 32], strides = [1, 1]} : vector<8x96xf32> to vector<8x32xf32>
    %198 = vector.extract_strided_slice %193 {offsets = [0, 64], sizes = [8, 32], strides = [1, 1]} : vector<8x96xf32> to vector<8x32xf32>
    %199 = arith.mulf %197, %184 : vector<8x32xf32>
    %200 = arith.mulf %196, %195 : vector<8x32xf32>
    %201 = arith.addf %199, %200 : vector<8x32xf32>
    %202 = math.tanh %201 : vector<8x32xf32>
    %203 = arith.mulf %198, %202 : vector<8x32xf32>
    %204 = vector.extract_strided_slice %180 {offsets = [8, 0], sizes = [8, 128], strides = [1, 1]} : vector<64x128xf32> to vector<8x128xf32>
    %cst_54 = arith.constant dense<0.000000e+00> : vector<8x128xf32>
    %205 = tpu.matmul %203, %175, %cst_54 {dimension_numbers = #tpu.dot_dimension_numbers<[1], [0], [0], [1], [0, 0, 1, 1], [], []>} : vector<8x32xf32>, vector<32x128xf32>, vector<8x128xf32> -> vector<8x128xf32>
    %206 = arith.addf %204, %205 : vector<8x128xf32>
    %207 = vector.extract_strided_slice %206 {offsets = [0, 0], sizes = [8, 96], strides = [1, 1]} : vector<8x128xf32> to vector<8x96xf32>
    %208 = arith.negf %207 : vector<8x96xf32>
    %209 = math.exp %208 : vector<8x96xf32>
    %cst_55 = arith.constant 1.000000e+00 : f32
    %210 = vector.broadcast %cst_55 : f32 to vector<8x96xf32>
    %211 = arith.addf %210, %209 : vector<8x96xf32>
    %212 = arith.divf %210, %211 : vector<8x96xf32>
    %213 = vector.extract_strided_slice %206 {offsets = [0, 96], sizes = [8, 32], strides = [1, 1]} : vector<8x128xf32> to vector<8x32xf32>
    %214 = math.tanh %213 : vector<8x32xf32>
    %215 = vector.extract_strided_slice %212 {offsets = [0, 0], sizes = [8, 32], strides = [1, 1]} : vector<8x96xf32> to vector<8x32xf32>
    %216 = vector.extract_strided_slice %212 {offsets = [0, 32], sizes = [8, 32], strides = [1, 1]} : vector<8x96xf32> to vector<8x32xf32>
    %217 = vector.extract_strided_slice %212 {offsets = [0, 64], sizes = [8, 32], strides = [1, 1]} : vector<8x96xf32> to vector<8x32xf32>
    %218 = arith.mulf %216, %201 : vector<8x32xf32>
    %219 = arith.mulf %215, %214 : vector<8x32xf32>
    %220 = arith.addf %218, %219 : vector<8x32xf32>
    %221 = math.tanh %220 : vector<8x32xf32>
    %222 = arith.mulf %217, %221 : vector<8x32xf32>
    %223 = vector.extract_strided_slice %180 {offsets = [16, 0], sizes = [8, 128], strides = [1, 1]} : vector<64x128xf32> to vector<8x128xf32>
    %cst_56 = arith.constant dense<0.000000e+00> : vector<8x128xf32>
    %224 = tpu.matmul %222, %175, %cst_56 {dimension_numbers = #tpu.dot_dimension_numbers<[1], [0], [0], [1], [0, 0, 1, 1], [], []>} : vector<8x32xf32>, vector<32x128xf32>, vector<8x128xf32> -> vector<8x128xf32>
    %225 = arith.addf %223, %224 : vector<8x128xf32>
    %226 = vector.extract_strided_slice %225 {offsets = [0, 0], sizes = [8, 96], strides = [1, 1]} : vector<8x128xf32> to vector<8x96xf32>
    %227 = arith.negf %226 : vector<8x96xf32>
    %228 = math.exp %227 : vector<8x96xf32>
    %cst_57 = arith.constant 1.000000e+00 : f32
    %229 = vector.broadcast %cst_57 : f32 to vector<8x96xf32>
    %230 = arith.addf %229, %228 : vector<8x96xf32>
    %231 = arith.divf %229, %230 : vector<8x96xf32>
    %232 = vector.extract_strided_slice %225 {offsets = [0, 96], sizes = [8, 32], strides = [1, 1]} : vector<8x128xf32> to vector<8x32xf32>
    %233 = math.tanh %232 : vector<8x32xf32>
    %234 = vector.extract_strided_slice %231 {offsets = [0, 0], sizes = [8, 32], strides = [1, 1]} : vector<8x96xf32> to vector<8x32xf32>
    %235 = vector.extract_strided_slice %231 {offsets = [0, 32], sizes = [8, 32], strides = [1, 1]} : vector<8x96xf32> to vector<8x32xf32>
    %236 = vector.extract_strided_slice %231 {offsets = [0, 64], sizes = [8, 32], strides = [1, 1]} : vector<8x96xf32> to vector<8x32xf32>
    %237 = arith.mulf %235, %220 : vector<8x32xf32>
    %238 = arith.mulf %234, %233 : vector<8x32xf32>
    %239 = arith.addf %237, %238 : vector<8x32xf32>
    %240 = math.tanh %239 : vector<8x32xf32>
    %241 = arith.mulf %236, %240 : vector<8x32xf32>
    %242 = vector.extract_strided_slice %180 {offsets = [24, 0], sizes = [8, 128], strides = [1, 1]} : vector<64x128xf32> to vector<8x128xf32>
    %cst_58 = arith.constant dense<0.000000e+00> : vector<8x128xf32>
    %243 = tpu.matmul %241, %175, %cst_58 {dimension_numbers = #tpu.dot_dimension_numbers<[1], [0], [0], [1], [0, 0, 1, 1], [], []>} : vector<8x32xf32>, vector<32x128xf32>, vector<8x128xf32> -> vector<8x128xf32>
    %244 = arith.addf %242, %243 : vector<8x128xf32>
    %245 = vector.extract_strided_slice %244 {offsets = [0, 0], sizes = [8, 96], strides = [1, 1]} : vector<8x128xf32> to vector<8x96xf32>
    %246 = arith.negf %245 : vector<8x96xf32>
    %247 = math.exp %246 : vector<8x96xf32>
    %cst_59 = arith.constant 1.000000e+00 : f32
    %248 = vector.broadcast %cst_59 : f32 to vector<8x96xf32>
    %249 = arith.addf %248, %247 : vector<8x96xf32>
    %250 = arith.divf %248, %249 : vector<8x96xf32>
    %251 = vector.extract_strided_slice %244 {offsets = [0, 96], sizes = [8, 32], strides = [1, 1]} : vector<8x128xf32> to vector<8x32xf32>
    %252 = math.tanh %251 : vector<8x32xf32>
    %253 = vector.extract_strided_slice %250 {offsets = [0, 0], sizes = [8, 32], strides = [1, 1]} : vector<8x96xf32> to vector<8x32xf32>
    %254 = vector.extract_strided_slice %250 {offsets = [0, 32], sizes = [8, 32], strides = [1, 1]} : vector<8x96xf32> to vector<8x32xf32>
    %255 = vector.extract_strided_slice %250 {offsets = [0, 64], sizes = [8, 32], strides = [1, 1]} : vector<8x96xf32> to vector<8x32xf32>
    %256 = arith.mulf %254, %239 : vector<8x32xf32>
    %257 = arith.mulf %253, %252 : vector<8x32xf32>
    %258 = arith.addf %256, %257 : vector<8x32xf32>
    %259 = math.tanh %258 : vector<8x32xf32>
    %260 = arith.mulf %255, %259 : vector<8x32xf32>
    %261 = vector.extract_strided_slice %180 {offsets = [32, 0], sizes = [8, 128], strides = [1, 1]} : vector<64x128xf32> to vector<8x128xf32>
    %cst_60 = arith.constant dense<0.000000e+00> : vector<8x128xf32>
    %262 = tpu.matmul %260, %175, %cst_60 {dimension_numbers = #tpu.dot_dimension_numbers<[1], [0], [0], [1], [0, 0, 1, 1], [], []>} : vector<8x32xf32>, vector<32x128xf32>, vector<8x128xf32> -> vector<8x128xf32>
    %263 = arith.addf %261, %262 : vector<8x128xf32>
    %264 = vector.extract_strided_slice %263 {offsets = [0, 0], sizes = [8, 96], strides = [1, 1]} : vector<8x128xf32> to vector<8x96xf32>
    %265 = arith.negf %264 : vector<8x96xf32>
    %266 = math.exp %265 : vector<8x96xf32>
    %cst_61 = arith.constant 1.000000e+00 : f32
    %267 = vector.broadcast %cst_61 : f32 to vector<8x96xf32>
    %268 = arith.addf %267, %266 : vector<8x96xf32>
    %269 = arith.divf %267, %268 : vector<8x96xf32>
    %270 = vector.extract_strided_slice %263 {offsets = [0, 96], sizes = [8, 32], strides = [1, 1]} : vector<8x128xf32> to vector<8x32xf32>
    %271 = math.tanh %270 : vector<8x32xf32>
    %272 = vector.extract_strided_slice %269 {offsets = [0, 0], sizes = [8, 32], strides = [1, 1]} : vector<8x96xf32> to vector<8x32xf32>
    %273 = vector.extract_strided_slice %269 {offsets = [0, 32], sizes = [8, 32], strides = [1, 1]} : vector<8x96xf32> to vector<8x32xf32>
    %274 = vector.extract_strided_slice %269 {offsets = [0, 64], sizes = [8, 32], strides = [1, 1]} : vector<8x96xf32> to vector<8x32xf32>
    %275 = arith.mulf %273, %258 : vector<8x32xf32>
    %276 = arith.mulf %272, %271 : vector<8x32xf32>
    %277 = arith.addf %275, %276 : vector<8x32xf32>
    %278 = math.tanh %277 : vector<8x32xf32>
    %279 = arith.mulf %274, %278 : vector<8x32xf32>
    %280 = vector.extract_strided_slice %180 {offsets = [40, 0], sizes = [8, 128], strides = [1, 1]} : vector<64x128xf32> to vector<8x128xf32>
    %cst_62 = arith.constant dense<0.000000e+00> : vector<8x128xf32>
    %281 = tpu.matmul %279, %175, %cst_62 {dimension_numbers = #tpu.dot_dimension_numbers<[1], [0], [0], [1], [0, 0, 1, 1], [], []>} : vector<8x32xf32>, vector<32x128xf32>, vector<8x128xf32> -> vector<8x128xf32>
    %282 = arith.addf %280, %281 : vector<8x128xf32>
    %283 = vector.extract_strided_slice %282 {offsets = [0, 0], sizes = [8, 96], strides = [1, 1]} : vector<8x128xf32> to vector<8x96xf32>
    %284 = arith.negf %283 : vector<8x96xf32>
    %285 = math.exp %284 : vector<8x96xf32>
    %cst_63 = arith.constant 1.000000e+00 : f32
    %286 = vector.broadcast %cst_63 : f32 to vector<8x96xf32>
    %287 = arith.addf %286, %285 : vector<8x96xf32>
    %288 = arith.divf %286, %287 : vector<8x96xf32>
    %289 = vector.extract_strided_slice %282 {offsets = [0, 96], sizes = [8, 32], strides = [1, 1]} : vector<8x128xf32> to vector<8x32xf32>
    %290 = math.tanh %289 : vector<8x32xf32>
    %291 = vector.extract_strided_slice %288 {offsets = [0, 0], sizes = [8, 32], strides = [1, 1]} : vector<8x96xf32> to vector<8x32xf32>
    %292 = vector.extract_strided_slice %288 {offsets = [0, 32], sizes = [8, 32], strides = [1, 1]} : vector<8x96xf32> to vector<8x32xf32>
    %293 = vector.extract_strided_slice %288 {offsets = [0, 64], sizes = [8, 32], strides = [1, 1]} : vector<8x96xf32> to vector<8x32xf32>
    %294 = arith.mulf %292, %277 : vector<8x32xf32>
    %295 = arith.mulf %291, %290 : vector<8x32xf32>
    %296 = arith.addf %294, %295 : vector<8x32xf32>
    %297 = math.tanh %296 : vector<8x32xf32>
    %298 = arith.mulf %293, %297 : vector<8x32xf32>
    %299 = vector.extract_strided_slice %180 {offsets = [48, 0], sizes = [8, 128], strides = [1, 1]} : vector<64x128xf32> to vector<8x128xf32>
    %cst_64 = arith.constant dense<0.000000e+00> : vector<8x128xf32>
    %300 = tpu.matmul %298, %175, %cst_64 {dimension_numbers = #tpu.dot_dimension_numbers<[1], [0], [0], [1], [0, 0, 1, 1], [], []>} : vector<8x32xf32>, vector<32x128xf32>, vector<8x128xf32> -> vector<8x128xf32>
    %301 = arith.addf %299, %300 : vector<8x128xf32>
    %302 = vector.extract_strided_slice %301 {offsets = [0, 0], sizes = [8, 96], strides = [1, 1]} : vector<8x128xf32> to vector<8x96xf32>
    %303 = arith.negf %302 : vector<8x96xf32>
    %304 = math.exp %303 : vector<8x96xf32>
    %cst_65 = arith.constant 1.000000e+00 : f32
    %305 = vector.broadcast %cst_65 : f32 to vector<8x96xf32>
    %306 = arith.addf %305, %304 : vector<8x96xf32>
    %307 = arith.divf %305, %306 : vector<8x96xf32>
    %308 = vector.extract_strided_slice %301 {offsets = [0, 96], sizes = [8, 32], strides = [1, 1]} : vector<8x128xf32> to vector<8x32xf32>
    %309 = math.tanh %308 : vector<8x32xf32>
    %310 = vector.extract_strided_slice %307 {offsets = [0, 0], sizes = [8, 32], strides = [1, 1]} : vector<8x96xf32> to vector<8x32xf32>
    %311 = vector.extract_strided_slice %307 {offsets = [0, 32], sizes = [8, 32], strides = [1, 1]} : vector<8x96xf32> to vector<8x32xf32>
    %312 = vector.extract_strided_slice %307 {offsets = [0, 64], sizes = [8, 32], strides = [1, 1]} : vector<8x96xf32> to vector<8x32xf32>
    %313 = arith.mulf %311, %296 : vector<8x32xf32>
    %314 = arith.mulf %310, %309 : vector<8x32xf32>
    %315 = arith.addf %313, %314 : vector<8x32xf32>
    %316 = math.tanh %315 : vector<8x32xf32>
    %317 = arith.mulf %312, %316 : vector<8x32xf32>
    %318 = vector.extract_strided_slice %180 {offsets = [56, 0], sizes = [8, 128], strides = [1, 1]} : vector<64x128xf32> to vector<8x128xf32>
    %cst_66 = arith.constant dense<0.000000e+00> : vector<8x128xf32>
    %319 = tpu.matmul %317, %175, %cst_66 {dimension_numbers = #tpu.dot_dimension_numbers<[1], [0], [0], [1], [0, 0, 1, 1], [], []>} : vector<8x32xf32>, vector<32x128xf32>, vector<8x128xf32> -> vector<8x128xf32>
    %320 = arith.addf %318, %319 : vector<8x128xf32>
    %321 = vector.extract_strided_slice %320 {offsets = [0, 0], sizes = [8, 96], strides = [1, 1]} : vector<8x128xf32> to vector<8x96xf32>
    %322 = arith.negf %321 : vector<8x96xf32>
    %323 = math.exp %322 : vector<8x96xf32>
    %cst_67 = arith.constant 1.000000e+00 : f32
    %324 = vector.broadcast %cst_67 : f32 to vector<8x96xf32>
    %325 = arith.addf %324, %323 : vector<8x96xf32>
    %326 = arith.divf %324, %325 : vector<8x96xf32>
    %327 = vector.extract_strided_slice %320 {offsets = [0, 96], sizes = [8, 32], strides = [1, 1]} : vector<8x128xf32> to vector<8x32xf32>
    %328 = math.tanh %327 : vector<8x32xf32>
    %329 = vector.extract_strided_slice %326 {offsets = [0, 0], sizes = [8, 32], strides = [1, 1]} : vector<8x96xf32> to vector<8x32xf32>
    %330 = vector.extract_strided_slice %326 {offsets = [0, 32], sizes = [8, 32], strides = [1, 1]} : vector<8x96xf32> to vector<8x32xf32>
    %331 = vector.extract_strided_slice %326 {offsets = [0, 64], sizes = [8, 32], strides = [1, 1]} : vector<8x96xf32> to vector<8x32xf32>
    %332 = arith.mulf %330, %315 : vector<8x32xf32>
    %333 = arith.mulf %329, %328 : vector<8x32xf32>
    %334 = arith.addf %332, %333 : vector<8x32xf32>
    %335 = math.tanh %334 : vector<8x32xf32>
    %336 = arith.mulf %331, %335 : vector<8x32xf32>
    %c1_68 = arith.constant 1 : index
    %c0_69 = arith.constant 0 : index
    %c0_70 = arith.constant 0 : index
    %337 = vector.load %arg10[%c1_68, %c0_69, %c0_70] : memref<2x8x32xf32, #tpu.memory_space<vmem>>, vector<1x8x32xf32>
    %338 = vector.shape_cast %337 : vector<1x8x32xf32> to vector<8x32xf32>
    %339 = vector.shape_cast %336 : vector<8x32xf32> to vector<1x8x32xf32>
    tpu.vector_store %arg10[%c1_68, %c0_69, %c0_70], %339 {strides = array<i32>} : memref<2x8x32xf32, #tpu.memory_space<vmem>>, vector<1x8x32xf32>,
    %c1_71 = arith.constant 1 : index
    %c0_72 = arith.constant 0 : index
    %c0_73 = arith.constant 0 : index
    %340 = vector.load %arg11[%c1_71, %c0_72, %c0_73] : memref<2x8x32xf32, #tpu.memory_space<vmem>>, vector<1x8x32xf32>
    %341 = vector.shape_cast %340 : vector<1x8x32xf32> to vector<8x32xf32>
    %342 = vector.shape_cast %334 : vector<8x32xf32> to vector<1x8x32xf32>
    tpu.vector_store %arg11[%c1_71, %c0_72, %c0_73], %342 {strides = array<i32>} : memref<2x8x32xf32, #tpu.memory_space<vmem>>, vector<1x8x32xf32>,
    %c0_74 = arith.constant 0 : index
    %c0_75 = arith.constant 0 : index
    %343 = vector.load %arg7[%c0_74, %c0_75] : memref<32x128xf32, #tpu.memory_space<vmem>>, vector<32x128xf32>
    %cst_76 = arith.constant dense<0.000000e+00> : vector<8x128xf32>
    %344 = tpu.matmul %336, %343, %cst_76 {dimension_numbers = #tpu.dot_dimension_numbers<[1], [0], [0], [1], [0, 0, 1, 1], [], []>} : vector<8x32xf32>, vector<32x128xf32>, vector<8x128xf32> -> vector<8x128xf32>
    %c0_77 = arith.constant 0 : index
    %c0_78 = arith.constant 0 : index
    %345 = vector.load %arg8[%c0_77, %c0_78] : memref<1x128xf32, #tpu.memory_space<vmem>>, vector<1x128xf32>
    %346 = vector.broadcast %345 : vector<1x128xf32> to vector<8x128xf32>
    %347 = arith.addf %344, %346 : vector<8x128xf32>
    %c0_79 = arith.constant 0 : index
    %c0_80 = arith.constant 0 : index
    %348 = vector.load %arg9[%c0_79, %c0_80] : memref<8x128xf32, #tpu.memory_space<vmem>>, vector<8x128xf32>
    tpu.vector_store %arg9[%c0_79, %c0_80], %347 {strides = array<i32>} : memref<8x128xf32, #tpu.memory_space<vmem>>, vector<8x128xf32>,
    return
  }
}

</mosaic_0001>

<llo_original>
// kernel: tpu_custom_call.1
$region0: #{tpu_custom_call.1}
  #allocation0 [shape = 'u32[]', space=smem, size = 0x4, offset = 0x4, fixed_abs, tag = 'smem constant byte address 0x4 - core index']
  #allocation1 [shape = 'u32[144,128]{1,0:T(1,128)}', space=vmem, size = 0x12000, scoped, tag = 'internal scratch']
  %s0 = inlined_call_operand.vmem [shape: f32[64,8], index: 0, kind: input, shape index: {}]
  %s1 = inlined_call_operand.hbm [shape: f32[8,128], index: 1, kind: input, shape index: {}]
  %s2 = inlined_call_operand.hbm [shape: f32[1,32,128], index: 2, kind: input, shape index: {}]
  %s3 = inlined_call_operand.vmem [shape: f32[2,32,128], index: 3, kind: input, shape index: {}]
  %s4 = inlined_call_operand.vmem [shape: f32[2,1,128], index: 4, kind: input, shape index: {}]
  %s5 = inlined_call_operand.hbm [shape: f32[2,8,32], index: 5, kind: input, shape index: {}]
  %s6 = inlined_call_operand.hbm [shape: f32[2,8,32], index: 6, kind: input, shape index: {}]
  %s7 = inlined_call_operand.vmem [shape: f32[32,128], index: 7, kind: input, shape index: {}]
  %s8 = inlined_call_operand.vmem [shape: f32[1,128], index: 8, kind: input, shape index: {}]
  %s9 = inlined_call_operand.hbm [shape: f32[8,128], index: 9, kind: output, shape index: {0}]
  %s10 = inlined_call_operand.hbm [shape: f32[2,8,32], index: 10, kind: output, shape index: {1}]
  %s11 = inlined_call_operand.hbm [shape: f32[2,8,32], index: 11, kind: output, shape index: {2}]
  %12 = xla_tuple %s9, %s10, %s11
  %s13 = sld [smem:[#allocation0]]
  $region78: #{tpu_custom_call.1} parent=0
    _
  %s15 = ssub.s32 1, %s13
  %s16 = scalar_select 0, %s15, %s13
  $region1: #{tpu_custom_call.1} parent=0
    #allocation2 [shape = 'u8[4096]{0}', space=vmem, size = 0x1000, scoped, tag = 'input window, operand 1, single buffered']
    #allocation3 [shape = 's32[1]{0}', space=sflag, size = 0x4, scoped, tag = 'scoped memory for tpu_custom_call.1']
    #allocation4 [shape = 's32[1]{0}', space=sflag, size = 0x4, scoped, tag = 'scoped memory for tpu_custom_call.1']
    #allocation5 [shape = 'u8[16384]{0}', space=vmem, size = 0x4000, scoped, tag = 'input window, operand 2, single buffered']
    #allocation6 [shape = 's32[1]{0}', space=sflag, size = 0x4, scoped, tag = 'scoped memory for tpu_custom_call.1']
    #allocation7 [shape = 'u8[8192]{0}', space=vmem, size = 0x2000, scoped, tag = 'input window, operand 5, single buffered']
    #allocation8 [shape = 'u8[8192]{0}', space=vmem, size = 0x2000, scoped, tag = 'input window, operand 6, single buffered']
    #allocation9 [shape = 's32[1]{0}', space=sflag, size = 0x4, scoped, tag = 'scoped memory for tpu_custom_call.1']
    #allocation10 [shape = 'u8[4096]{0}', space=vmem, size = 0x1000, scoped, tag = 'output window, operand 0, single buffered']
    #allocation11 [shape = 'u8[8192]{0}', space=vmem, size = 0x2000, scoped, tag = 'output window, operand 1, single buffered']
    #allocation12 [shape = 's32[1]{0}', space=sflag, size = 0x4, scoped, tag = 'scoped memory for tpu_custom_call.1']
    #allocation13 [shape = 'u8[8192]{0}', space=vmem, size = 0x2000, scoped, tag = 'output window, operand 2, single buffered']
    %17 = vsyncpa [#allocation3], 0
    %18 = vsyncpa [#allocation6], 0
    %19 = vsyncpa [#allocation9], 0
    %20 = vsyncpa [#allocation4], 0
    %21 = vsyncpa [#allocation12], 0
    // Predicated region
    $region2: #{tpu_custom_call.1} parent=1 // pred_check
      _
    $region3: #{tpu_custom_call.1} parent=1 // pred_check_branch
      %23 = sbr.rel (0) target = $region5
    $region4: #{tpu_custom_call.1} parent=1 // pred_region
      _
    $region5: #{tpu_custom_call.1} parent=1 // pred_fallthru
      _
    // Predicated region
    $region6: #{tpu_custom_call.1} parent=1 // pred_check
      _
    $region7: #{tpu_custom_call.1} parent=1 // pred_check_branch
      %25 = sbr.rel (0) target = $region9
    $region8: #{tpu_custom_call.1} parent=1 // pred_region
      %s27 = ssub.s32 128, 128
      %28 = vsyncadd [#allocation3], %s27
      %s30 = sshll.u32 [#allocation2], 4
      %s31 = int_to_ptr.vmem [resolvable:$true] %s30
      %33 = dma.hbm_to_vmem [thread:$0]  %s1, 128, %s31, [#allocation3]
    $region9: #{tpu_custom_call.1} parent=1 // pred_fallthru
      _
    // Predicated region
    $region10: #{tpu_custom_call.1} parent=1 // pred_check
      _
    $region11: #{tpu_custom_call.1} parent=1 // pred_check_branch
      %35 = sbr.rel (0) target = $region13
    $region12: #{tpu_custom_call.1} parent=1 // pred_region
      %s37 = ssub.s32 512, 512
      %38 = vsyncadd [#allocation6], %s37
      %s39 = sshll.u32 [#allocation5], 4
      %s40 = int_to_ptr.vmem [resolvable:$true] %s39
      %45 = dma.hbm_to_vmem [thread:$0]  %s2, 512, %s40, [#allocation6], 128, 128, 8
    $region13: #{tpu_custom_call.1} parent=1 // pred_fallthru
      _
    // Predicated region
    $region14: #{tpu_custom_call.1} parent=1 // pred_check
      _
    $region15: #{tpu_custom_call.1} parent=1 // pred_check_branch
      %47 = sbr.rel (0) target = $region17
    $region16: #{tpu_custom_call.1} parent=1 // pred_region
      _
    $region17: #{tpu_custom_call.1} parent=1 // pred_fallthru
      _
    // Predicated region
    $region18: #{tpu_custom_call.1} parent=1 // pred_check
      _
    $region19: #{tpu_custom_call.1} parent=1 // pred_check_branch
      %49 = sbr.rel (0) target = $region21
    $region20: #{tpu_custom_call.1} parent=1 // pred_region
      _
    $region21: #{tpu_custom_call.1} parent=1 // pred_fallthru
      _
    // Predicated region
    $region22: #{tpu_custom_call.1} parent=1 // pred_check
      _
    $region23: #{tpu_custom_call.1} parent=1 // pred_check_branch
      %51 = sbr.rel (0) target = $region25
    $region24: #{tpu_custom_call.1} parent=1 // pred_region
      %s53 = ssub.s32 256, 256
      %54 = vsyncadd [#allocation6], %s53
      %s55 = sshll.u32 [#allocation7], 4
      %s56 = int_to_ptr.vmem [resolvable:$true] %s55
      %61 = dma.hbm_to_vmem [thread:$0]  %s5, 256, %s56, [#allocation6], 128, 128, 8
    $region25: #{tpu_custom_call.1} parent=1 // pred_fallthru
      _
    // Predicated region
    $region26: #{tpu_custom_call.1} parent=1 // pred_check
      _
    $region27: #{tpu_custom_call.1} parent=1 // pred_check_branch
      %63 = sbr.rel (0) target = $region29
    $region28: #{tpu_custom_call.1} parent=1 // pred_region
      %s65 = ssub.s32 256, 256
      %66 = vsyncadd [#allocation9], %s65
      %s67 = sshll.u32 [#allocation8], 4
      %s68 = int_to_ptr.vmem [resolvable:$true] %s67
      %73 = dma.hbm_to_vmem [thread:$0]  %s6, 256, %s68, [#allocation9], 128, 128, 8
    $region29: #{tpu_custom_call.1} parent=1 // pred_fallthru
      _
    // Predicated region
    $region30: #{tpu_custom_call.1} parent=1 // pred_check
      _
    $region31: #{tpu_custom_call.1} parent=1 // pred_check_branch
      %75 = sbr.rel (0) target = $region33
    $region32: #{tpu_custom_call.1} parent=1 // pred_region
      _
    $region33: #{tpu_custom_call.1} parent=1 // pred_fallthru
      _
    // Predicated region
    $region34: #{tpu_custom_call.1} parent=1 // pred_check
      _
    $region35: #{tpu_custom_call.1} parent=1 // pred_check_branch
      %77 = sbr.rel (0) target = $region37
    $region36: #{tpu_custom_call.1} parent=1 // pred_region
      _
    $region37: #{tpu_custom_call.1} parent=1 // pred_fallthru
      _
    // Predicated region
    $region38: #{tpu_custom_call.1} parent=1 // pred_check
      _
    $region39: #{tpu_custom_call.1} parent=1 // pred_check_branch
      %79 = sbr.rel (0) target = $region41
    $region40: #{tpu_custom_call.1} parent=1 // pred_region
      %80 = dma.done [#allocation3], 128
    $region41: #{tpu_custom_call.1} parent=1 // pred_fallthru
      _
    // Predicated region
    $region42: #{tpu_custom_call.1} parent=1 // pred_check
      _
    $region43: #{tpu_custom_call.1} parent=1 // pred_check_branch
      %82 = sbr.rel (0) target = $region45
    $region44: #{tpu_custom_call.1} parent=1 // pred_region
      %83 = dma.done [#allocation6], 512
    $region45: #{tpu_custom_call.1} parent=1 // pred_fallthru
      _
    // Predicated region
    $region46: #{tpu_custom_call.1} parent=1 // pred_check
      _
    $region47: #{tpu_custom_call.1} parent=1 // pred_check_branch
      %85 = sbr.rel (0) target = $region49
    $region48: #{tpu_custom_call.1} parent=1 // pred_region
      %86 = dma.done [#allocation6], 256
    $region49: #{tpu_custom_call.1} parent=1 // pred_fallthru
      _
    // Predicated region
    $region50: #{tpu_custom_call.1} parent=1 // pred_check
      _
    $region51: #{tpu_custom_call.1} parent=1 // pred_check_branch
      %88 = sbr.rel (0) target = $region53
    $region52: #{tpu_custom_call.1} parent=1 // pred_region
      %89 = dma.done [#allocation9], 256
    $region53: #{tpu_custom_call.1} parent=1 // pred_fallthru
      _
    %v90 = vld [vmem:[%s0] sm:$0xff]
    %v91 = vld [vmem:[%s0 + $0x8] sm:$0xff]
    %v92 = vld [vmem:[%s0 + $0x10] sm:$0xff]
    %v93 = vld [vmem:[%s0 + $0x18] sm:$0xff]
    %v94 = vld [vmem:[%s0 + $0x20] sm:$0xff]
    %v95 = vld [vmem:[%s0 + $0x28] sm:$0xff]
    %v96 = vld [vmem:[%s0 + $0x30] sm:$0xff]
    %v97 = vld [vmem:[%s0 + $0x38] sm:$0xff]
    %v98 = vld [vmem:[#allocation2] sm:$0xff]
    %v99 = vld [vmem:[%s3] sm:$0xff]
    %v100 = vld [vmem:[%s3 + $0x8] sm:$0xff]
    %v101 = vld [vmem:[%s3 + $0x10] sm:$0xff]
    %v102 = vld [vmem:[%s3 + $0x18] sm:$0xff]
    %v103 = vld [vmem:[%s4] sm:$0x1]
    %v105 = vlaneseq
    %v106 = vshrl.u32 %v105, 7
    %v107 = vsub.s32 0, %v106
    %v108 = vrot.slane %v103, %v107
    %vm110 = vcmask 64512
    %v112 = vsel %vm110, %v90, 0
    %v115 = vsel %vm110, %v91, 0
    %v118 = vsel %vm110, %v92, 0
    %v121 = vsel %vm110, %v93, 0
    %v124 = vsel %vm110, %v94, 0
    %v127 = vsel %vm110, %v95, 0
    %v130 = vsel %vm110, %v96, 0
    %v133 = vsel %vm110, %v97, 0
    %135 = vmatprep.subr.mxu0 0.0
    %136 = vmatpush1.msra.mxu0 %v98
    %137 = vmatprep.subr.mxu0 0.0
    %138 = vmatpush1.msra.mxu0 0.0
    %139 = vmatprep.subr.mxu0 0.0
    %140 = vmatpush1.msra.mxu0 0.0
    %141 = vmatprep.subr.mxu0 0.0
    %142 = vmatpush1.msra.mxu0 0.0
    %143 = vmatprep.subr.mxu0 0.0
    %144 = vmatpush1.msra.mxu0 0.0
    %145 = vmatprep.subr.mxu0 0.0
    %146 = vmatpush1.msra.mxu0 0.0
    %147 = vmatprep.subr.mxu0 0.0
    %148 = vmatpush1.msra.mxu0 0.0
    %149 = vmatprep.subr.mxu0 0.0
    %150 = vmatpush1.msra.mxu0 0.0
    %151 = vmatprep.subr.mxu0 0.0
    %152 = vmatpush1.msra.mxu0 0.0
    %153 = vmatprep.subr.mxu0 0.0
    %154 = vmatpush1.msra.mxu0 0.0
    %155 = vmatprep.subr.mxu0 0.0
    %156 = vmatpush1.msra.mxu0 0.0
    %157 = vmatprep.subr.mxu0 0.0
    %158 = vmatpush1.msra.mxu0 0.0
    %159 = vmatprep.subr.mxu0 0.0
    %160 = vmatpush1.msra.mxu0 0.0
    %161 = vmatprep.subr.mxu0 0.0
    %162 = vmatpush1.msra.mxu0 0.0
    %163 = vmatprep.subr.mxu0 0.0
    %164 = vmatpush1.msra.mxu0 0.0
    %165 = vmatprep.subr.mxu0 0.0
    %166 = vmatpush1.msra.mxu0 0.0
    %167 = vmatprep.subr.mxu0 0.0
    %168 = vmatpush1.msra.mxu0 0.0
    %169 = vmatprep.subr.mxu0 0.0
    %170 = vmatpush1.msra.mxu0 0.0
    %171 = vmatprep.subr.mxu0 0.0
    %172 = vmatpush1.msra.mxu0 0.0
    %173 = vmatprep.subr.mxu0 0.0
    %174 = vmatpush1.msra.mxu0 0.0
    %175 = vmatprep.subr.mxu0 0.0
    %176 = vmatpush1.msra.mxu0 0.0
    %177 = vmatprep.subr.mxu0 0.0
    %178 = vmatpush1.msra.mxu0 0.0
    %179 = vmatprep.subr.mxu0 0.0
    %180 = vmatpush1.msra.mxu0 0.0
    %181 = vmatprep.subr.mxu0 0.0
    %182 = vmatpush1.msra.mxu0 0.0
    %183 = vmatprep.subr.mxu0 0.0
    %184 = vmatpush1.msra.mxu0 0.0
    %185 = vmatprep.subr.mxu0 0.0
    %186 = vmatpush1.msra.mxu0 0.0
    %187 = vmatprep.subr.mxu0 0.0
    %188 = vmatpush1.msra.mxu0 0.0
    %189 = vmatprep.subr.mxu0 0.0
    %190 = vmatpush1.msra.mxu0 0.0
    %191 = vmatprep.subr.mxu0 0.0
    %192 = vmatpush1.msra.mxu0 0.0
    %193 = vmatprep.subr.mxu0 0.0
    %194 = vmatpush1.msra.mxu0 0.0
    %195 = vmatprep.subr.mxu0 0.0
    %196 = vmatpush1.msra.mxu0 0.0
    %197 = vmatprep.subr.mxu0 0.0
    %198 = vmatpush1.msra.mxu0 0.0
    %199 = vmatprep.mubr.f32.mxu0 0.0
    %200 = vmatmul.mubr.f32.gmra.mrb[0].mxu0 %v112
    %v201 = vpop.f32.mrb[0].mxu0
    %v202 = vadd.f32 %v108, %v201
    %v203 = vpop.f32.mrb[0].mxu0
    %204 = vmatprep.mubr.f32.mxu0 0.0
    %205 = vmatmul.mubr.f32.gmra.mrb[0].mxu0 %v115
    %v206 = vpop.f32.mrb[0].mxu0
    %v207 = vadd.f32 %v108, %v206
    %v208 = vpop.f32.mrb[0].mxu0
    %209 = vmatprep.mubr.f32.mxu0 0.0
    %210 = vmatmul.mubr.f32.gmra.mrb[0].mxu0 %v118
    %v211 = vpop.f32.mrb[0].mxu0
    %v212 = vadd.f32 %v108, %v211
    %v213 = vpop.f32.mrb[0].mxu0
    %214 = vmatprep.mubr.f32.mxu0 0.0
    %215 = vmatmul.mubr.f32.gmra.mrb[0].mxu0 %v121
    %v216 = vpop.f32.mrb[0].mxu0
    %v217 = vadd.f32 %v108, %v216
    %v218 = vpop.f32.mrb[0].mxu0
    %219 = vmatprep.mubr.f32.mxu0 0.0
    %220 = vmatmul.mubr.f32.gmra.mrb[0].mxu0 %v124
    %v221 = vpop.f32.mrb[0].mxu0
    %v222 = vadd.f32 %v108, %v221
    %v223 = vpop.f32.mrb[0].mxu0
    %224 = vmatprep.mubr.f32.mxu0 0.0
    %225 = vmatmul.mubr.f32.gmra.mrb[0].mxu0 %v127
    %v226 = vpop.f32.mrb[0].mxu0
    %v227 = vadd.f32 %v108, %v226
    %v228 = vpop.f32.mrb[0].mxu0
    %229 = vmatprep.mubr.f32.mxu0 0.0
    %230 = vmatmul.mubr.f32.gmra.mrb[0].mxu0 %v130
    %v231 = vpop.f32.mrb[0].mxu0
    %v232 = vadd.f32 %v108, %v231
    %v233 = vpop.f32.mrb[0].mxu0
    %234 = vmatprep.mubr.f32.mxu0 0.0
    %235 = vmatmul.mubr.f32.gmra.mrb[0].mxu0 %v133
    %v236 = vpop.f32.mrb[0].mxu0
    %v237 = vadd.f32 %v108, %v236
    %v238 = vpop.f32.mrb[0].mxu0
    %239 = vdwg.mxu0
    %v240 = vld [vmem:[#allocation7] sm:$0xff]
    %v241 = vld [vmem:[#allocation8] sm:$0xff]
    %vm242 = vcmask 261120
    %v244 = vsel %vm242, %v240, 0
    %246 = vmatprep.subr.mxu0 0.0
    %247 = vmatpush1.msra.mxu0 %v99
    %248 = vmatprep.subr.mxu0 0.0
    %249 = vmatpush1.msra.mxu0 %v100
    %250 = vmatprep.subr.mxu0 0.0
    %251 = vmatpush1.msra.mxu0 %v101
    %252 = vmatprep.subr.mxu0 0.0
    %253 = vmatpush1.msra.mxu0 %v102
    %254 = vmatprep.subr.mxu0 0.0
    %255 = vmatpush1.msra.mxu0 0.0
    %256 = vmatprep.subr.mxu0 0.0
    %257 = vmatpush1.msra.mxu0 0.0
    %258 = vmatprep.subr.mxu0 0.0
    %259 = vmatpush1.msra.mxu0 0.0
    %260 = vmatprep.subr.mxu0 0.0
    %261 = vmatpush1.msra.mxu0 0.0
    %262 = vmatprep.subr.mxu0 0.0
    %263 = vmatpush1.msra.mxu0 0.0
    %264 = vmatprep.subr.mxu0 0.0
    %265 = vmatpush1.msra.mxu0 0.0
    %266 = vmatprep.subr.mxu0 0.0
    %267 = vmatpush1.msra.mxu0 0.0
    %268 = vmatprep.subr.mxu0 0.0
    %269 = vmatpush1.msra.mxu0 0.0
    %270 = vmatprep.subr.mxu0 0.0
    %271 = vmatpush1.msra.mxu0 0.0
    %272 = vmatprep.subr.mxu0 0.0
    %273 = vmatpush1.msra.mxu0 0.0
    %274 = vmatprep.subr.mxu0 0.0
    %275 = vmatpush1.msra.mxu0 0.0
    %276 = vmatprep.subr.mxu0 0.0
    %277 = vmatpush1.msra.mxu0 0.0
    %278 = vmatprep.subr.mxu0 0.0
    %279 = vmatpush1.msra.mxu0 0.0
    %280 = vmatprep.subr.mxu0 0.0
    %281 = vmatpush1.msra.mxu0 0.0
    %282 = vmatprep.subr.mxu0 0.0
    %283 = vmatpush1.msra.mxu0 0.0
    %284 = vmatprep.subr.mxu0 0.0
    %285 = vmatpush1.msra.mxu0 0.0
    %286 = vmatprep.subr.mxu0 0.0
    %287 = vmatpush1.msra.mxu0 0.0
    %288 = vmatprep.subr.mxu0 0.0
    %289 = vmatpush1.msra.mxu0 0.0
    %290 = vmatprep.subr.mxu0 0.0
    %291 = vmatpush1.msra.mxu0 0.0
    %292 = vmatprep.subr.mxu0 0.0
    %293 = vmatpush1.msra.mxu0 0.0
    %294 = vmatprep.subr.mxu0 0.0
    %295 = vmatpush1.msra.mxu0 0.0
    %296 = vmatprep.subr.mxu0 0.0
    %297 = vmatpush1.msra.mxu0 0.0
    %298 = vmatprep.subr.mxu0 0.0
    %299 = vmatpush1.msra.mxu0 0.0
    %300 = vmatprep.subr.mxu0 0.0
    %301 = vmatpush1.msra.mxu0 0.0
    %302 = vmatprep.subr.mxu0 0.0
    %303 = vmatpush1.msra.mxu0 0.0
    %304 = vmatprep.subr.mxu0 0.0
    %305 = vmatpush1.msra.mxu0 0.0
    %306 = vmatprep.subr.mxu0 0.0
    %307 = vmatpush1.msra.mxu0 0.0
    %308 = vmatprep.subr.mxu0 0.0
    %309 = vmatpush1.msra.mxu0 0.0
    %310 = vmatprep.mubr.f32.mxu0 0.0
    %311 = vmatmul.mubr.f32.gmra.mrb[0].mxu0 %v244
    %v312 = vpop.f32.mrb[0].mxu0
    %v313 = vadd.f32 0.0, %v312
    %v314 = vpop.f32.mrb[0].mxu0
    %315 = vdwg.mxu0
    %v316 = vadd.f32 %v202, %v313
    %v317 = vxor.u32 %v316, 2147483648
    %v318 = vmul.f32 %v317, 1.442695
    %v319 = vpow.pop %v318
    %v320 = vadd.f32 %v319, 1.0
    %v321 = vrcp.pop %v320
    %v322 = vmul.f32 1.0, %v321
    %v323 = vtanh.pop %v316
    %325 = vrot.lane.b32.xlu0 %v241, 32
    %v326 = vpop.permute.xlu0 %325
    %v328 = vmul.f32 %v322, %v326
    %330 = vrot.lane.b32.xlu0 %v323, 32
    %v331 = vpop.permute.xlu0 %330
    %v333 = vmul.f32 %v322, %v331
    %335 = vrot.lane.b32.xlu0 %v333, 32
    %v336 = vpop.permute.xlu0 %335
    %v338 = vadd.f32 %v328, %v336
    %v339 = vtanh.pop %v338
    %341 = vrot.lane.b32.xlu0 %v339, 32
    %v342 = vpop.permute.xlu0 %341
    %v344 = vmul.f32 %v322, %v342
    %346 = vrot.lane.b32.xlu0 %v344, 64
    %v347 = vpop.permute.xlu0 %346
    %v348 = vsel %vm242, %v347, 0
    %350 = vmatprep.subr.mxu0 0.0
    %351 = vmatpush1.msra.mxu0 %v99
    %352 = vmatprep.subr.mxu0 0.0
    %353 = vmatpush1.msra.mxu0 %v100
    %354 = vmatprep.subr.mxu0 0.0
    %355 = vmatpush1.msra.mxu0 %v101
    %356 = vmatprep.subr.mxu0 0.0
    %357 = vmatpush1.msra.mxu0 %v102
    %358 = vmatprep.subr.mxu0 0.0
    %359 = vmatpush1.msra.mxu0 0.0
    %360 = vmatprep.subr.mxu0 0.0
    %361 = vmatpush1.msra.mxu0 0.0
    %362 = vmatprep.subr.mxu0 0.0
    %363 = vmatpush1.msra.mxu0 0.0
    %364 = vmatprep.subr.mxu0 0.0
    %365 = vmatpush1.msra.mxu0 0.0
    %366 = vmatprep.subr.mxu0 0.0
    %367 = vmatpush1.msra.mxu0 0.0
    %368 = vmatprep.subr.mxu0 0.0
    %369 = vmatpush1.msra.mxu0 0.0
    %370 = vmatprep.subr.mxu0 0.0
    %371 = vmatpush1.msra.mxu0 0.0
    %372 = vmatprep.subr.mxu0 0.0
    %373 = vmatpush1.msra.mxu0 0.0
    %374 = vmatprep.subr.mxu0 0.0
    %375 = vmatpush1.msra.mxu0 0.0
    %376 = vmatprep.subr.mxu0 0.0
    %377 = vmatpush1.msra.mxu0 0.0
    %378 = vmatprep.subr.mxu0 0.0
    %379 = vmatpush1.msra.mxu0 0.0
    %380 = vmatprep.subr.mxu0 0.0
    %381 = vmatpush1.msra.mxu0 0.0
    %382 = vmatprep.subr.mxu0 0.0
    %383 = vmatpush1.msra.mxu0 0.0
    %384 = vmatprep.subr.mxu0 0.0
    %385 = vmatpush1.msra.mxu0 0.0
    %386 = vmatprep.subr.mxu0 0.0
    %387 = vmatpush1.msra.mxu0 0.0
    %388 = vmatprep.subr.mxu0 0.0
    %389 = vmatpush1.msra.mxu0 0.0
    %390 = vmatprep.subr.mxu0 0.0
    %391 = vmatpush1.msra.mxu0 0.0
    %392 = vmatprep.subr.mxu0 0.0
    %393 = vmatpush1.msra.mxu0 0.0
    %394 = vmatprep.subr.mxu0 0.0
    %395 = vmatpush1.msra.mxu0 0.0
    %396 = vmatprep.subr.mxu0 0.0
    %397 = vmatpush1.msra.mxu0 0.0
    %398 = vmatprep.subr.mxu0 0.0
    %399 = vmatpush1.msra.mxu0 0.0
    %400 = vmatprep.subr.mxu0 0.0
    %401 = vmatpush1.msra.mxu0 0.0
    %402 = vmatprep.subr.mxu0 0.0
    %403 = vmatpush1.msra.mxu0 0.0
    %404 = vmatprep.subr.mxu0 0.0
    %405 = vmatpush1.msra.mxu0 0.0
    %406 = vmatprep.subr.mxu0 0.0
    %407 = vmatpush1.msra.mxu0 0.0
    %408 = vmatprep.subr.mxu0 0.0
    %409 = vmatpush1.msra.mxu0 0.0
    %410 = vmatprep.subr.mxu0 0.0
    %411 = vmatpush1.msra.mxu0 0.0
    %412 = vmatprep.subr.mxu0 0.0
    %413 = vmatpush1.msra.mxu0 0.0
    %414 = vmatprep.mubr.f32.mxu0 0.0
    %415 = vmatmul.mubr.f32.gmra.mrb[0].mxu0 %v348
    %v416 = vpop.f32.mrb[0].mxu0
    %v417 = vadd.f32 0.0, %v416
    %v418 = vpop.f32.mrb[0].mxu0
    %419 = vdwg.mxu0
    %v420 = vadd.f32 %v207, %v417
    %v421 = vxor.u32 %v420, 2147483648
    %v422 = vmul.f32 %v421, 1.442695
    %v423 = vpow.pop %v422
    %v424 = vadd.f32 %v423, 1.0
    %v425 = vrcp.pop %v424
    %v426 = vmul.f32 1.0, %v425
    %v427 = vtanh.pop %v420
    %v428 = vmul.f32 %v426, %v338
    %430 = vrot.lane.b32.xlu0 %v427, 32
    %v431 = vpop.permute.xlu0 %430
    %v433 = vmul.f32 %v426, %v431
    %435 = vrot.lane.b32.xlu0 %v433, 32
    %v436 = vpop.permute.xlu0 %435
    %v438 = vadd.f32 %v428, %v436
    %v439 = vtanh.pop %v438
    %441 = vrot.lane.b32.xlu0 %v439, 32
    %v442 = vpop.permute.xlu0 %441
    %v444 = vmul.f32 %v426, %v442
    %446 = vrot.lane.b32.xlu0 %v444, 64
    %v447 = vpop.permute.xlu0 %446
    %v448 = vsel %vm242, %v447, 0
    %450 = vmatprep.subr.mxu0 0.0
    %451 = vmatpush1.msra.mxu0 %v99
    %452 = vmatprep.subr.mxu0 0.0
    %453 = vmatpush1.msra.mxu0 %v100
    %454 = vmatprep.subr.mxu0 0.0
    %455 = vmatpush1.msra.mxu0 %v101
    %456 = vmatprep.subr.mxu0 0.0
    %457 = vmatpush1.msra.mxu0 %v102
    %458 = vmatprep.subr.mxu0 0.0
    %459 = vmatpush1.msra.mxu0 0.0
    %460 = vmatprep.subr.mxu0 0.0
    %461 = vmatpush1.msra.mxu0 0.0
    %462 = vmatprep.subr.mxu0 0.0
    %463 = vmatpush1.msra.mxu0 0.0
    %464 = vmatprep.subr.mxu0 0.0
    %465 = vmatpush1.msra.mxu0 0.0
    %466 = vmatprep.subr.mxu0 0.0
    %467 = vmatpush1.msra.mxu0 0.0
    %468 = vmatprep.subr.mxu0 0.0
    %469 = vmatpush1.msra.mxu0 0.0
    %470 = vmatprep.subr.mxu0 0.0
    %471 = vmatpush1.msra.mxu0 0.0
    %472 = vmatprep.subr.mxu0 0.0
    %473 = vmatpush1.msra.mxu0 0.0
    %474 = vmatprep.subr.mxu0 0.0
    %475 = vmatpush1.msra.mxu0 0.0
    %476 = vmatprep.subr.mxu0 0.0
    %477 = vmatpush1.msra.mxu0 0.0
    %478 = vmatprep.subr.mxu0 0.0
    %479 = vmatpush1.msra.mxu0 0.0
    %480 = vmatprep.subr.mxu0 0.0
    %481 = vmatpush1.msra.mxu0 0.0
    %482 = vmatprep.subr.mxu0 0.0
    %483 = vmatpush1.msra.mxu0 0.0
    %484 = vmatprep.subr.mxu0 0.0
    %485 = vmatpush1.msra.mxu0 0.0
    %486 = vmatprep.subr.mxu0 0.0
    %487 = vmatpush1.msra.mxu0 0.0
    %488 = vmatprep.subr.mxu0 0.0
    %489 = vmatpush1.msra.mxu0 0.0
    %490 = vmatprep.subr.mxu0 0.0
    %491 = vmatpush1.msra.mxu0 0.0
    %492 = vmatprep.subr.mxu0 0.0
    %493 = vmatpush1.msra.mxu0 0.0
    %494 = vmatprep.subr.mxu0 0.0
    %495 = vmatpush1.msra.mxu0 0.0
    %496 = vmatprep.subr.mxu0 0.0
    %497 = vmatpush1.msra.mxu0 0.0
    %498 = vmatprep.subr.mxu0 0.0
    %499 = vmatpush1.msra.mxu0 0.0
    %500 = vmatprep.subr.mxu0 0.0
    %501 = vmatpush1.msra.mxu0 0.0
    %502 = vmatprep.subr.mxu0 0.0
    %503 = vmatpush1.msra.mxu0 0.0
    %504 = vmatprep.subr.mxu0 0.0
    %505 = vmatpush1.msra.mxu0 0.0
    %506 = vmatprep.subr.mxu0 0.0
    %507 = vmatpush1.msra.mxu0 0.0
    %508 = vmatprep.subr.mxu0 0.0
    %509 = vmatpush1.msra.mxu0 0.0
    %510 = vmatprep.subr.mxu0 0.0
    %511 = vmatpush1.msra.mxu0 0.0
    %512 = vmatprep.subr.mxu0 0.0
    %513 = vmatpush1.msra.mxu0 0.0
    %514 = vmatprep.mubr.f32.mxu0 0.0
    %515 = vmatmul.mubr.f32.gmra.mrb[0].mxu0 %v448
    %v516 = vpop.f32.mrb[0].mxu0
    %v517 = vadd.f32 0.0, %v516
    %v518 = vpop.f32.mrb[0].mxu0
    %519 = vdwg.mxu0
    %v520 = vadd.f32 %v212, %v517
    %v521 = vxor.u32 %v520, 2147483648
    %v522 = vmul.f32 %v521, 1.442695
    %v523 = vpow.pop %v522
    %v524 = vadd.f32 %v523, 1.0
    %v525 = vrcp.pop %v524
    %v526 = vmul.f32 1.0, %v525
    %v527 = vtanh.pop %v520
    %v528 = vmul.f32 %v526, %v438
    %530 = vrot.lane.b32.xlu0 %v527, 32
    %v531 = vpop.permute.xlu0 %530
    %v533 = vmul.f32 %v526, %v531
    %535 = vrot.lane.b32.xlu0 %v533, 32
    %v536 = vpop.permute.xlu0 %535
    %v538 = vadd.f32 %v528, %v536
    %v539 = vtanh.pop %v538
    %541 = vrot.lane.b32.xlu0 %v539, 32
    %v542 = vpop.permute.xlu0 %541
    %v544 = vmul.f32 %v526, %v542
    %546 = vrot.lane.b32.xlu0 %v544, 64
    %v547 = vpop.permute.xlu0 %546
    %v548 = vsel %vm242, %v547, 0
    %550 = vmatprep.subr.mxu0 0.0
    %551 = vmatpush1.msra.mxu0 %v99
    %552 = vmatprep.subr.mxu0 0.0
    %553 = vmatpush1.msra.mxu0 %v100
    %554 = vmatprep.subr.mxu0 0.0
    %555 = vmatpush1.msra.mxu0 %v101
    %556 = vmatprep.subr.mxu0 0.0
    %557 = vmatpush1.msra.mxu0 %v102
    %558 = vmatprep.subr.mxu0 0.0
    %559 = vmatpush1.msra.mxu0 0.0
    %560 = vmatprep.subr.mxu0 0.0
    %561 = vmatpush1.msra.mxu0 0.0
    %562 = vmatprep.subr.mxu0 0.0
    %563 = vmatpush1.msra.mxu0 0.0
    %564 = vmatprep.subr.mxu0 0.0
    %565 = vmatpush1.msra.mxu0 0.0
    %566 = vmatprep.subr.mxu0 0.0
    %567 = vmatpush1.msra.mxu0 0.0
    %568 = vmatprep.subr.mxu0 0.0
    %569 = vmatpush1.msra.mxu0 0.0
    %570 = vmatprep.subr.mxu0 0.0
    %571 = vmatpush1.msra.mxu0 0.0
    %572 = vmatprep.subr.mxu0 0.0
    %573 = vmatpush1.msra.mxu0 0.0
    %574 = vmatprep.subr.mxu0 0.0
    %575 = vmatpush1.msra.mxu0 0.0
    %576 = vmatprep.subr.mxu0 0.0
    %577 = vmatpush1.msra.mxu0 0.0
    %578 = vmatprep.subr.mxu0 0.0
    %579 = vmatpush1.msra.mxu0 0.0
    %580 = vmatprep.subr.mxu0 0.0
    %581 = vmatpush1.msra.mxu0 0.0
    %582 = vmatprep.subr.mxu0 0.0
    %583 = vmatpush1.msra.mxu0 0.0
    %584 = vmatprep.subr.mxu0 0.0
    %585 = vmatpush1.msra.mxu0 0.0
    %586 = vmatprep.subr.mxu0 0.0
    %587 = vmatpush1.msra.mxu0 0.0
    %588 = vmatprep.subr.mxu0 0.0
    %589 = vmatpush1.msra.mxu0 0.0
    %590 = vmatprep.subr.mxu0 0.0
    %591 = vmatpush1.msra.mxu0 0.0
    %592 = vmatprep.subr.mxu0 0.0
    %593 = vmatpush1.msra.mxu0 0.0
    %594 = vmatprep.subr.mxu0 0.0
    %595 = vmatpush1.msra.mxu0 0.0
    %596 = vmatprep.subr.mxu0 0.0
    %597 = vmatpush1.msra.mxu0 0.0
    %598 = vmatprep.subr.mxu0 0.0
    %599 = vmatpush1.msra.mxu0 0.0
    %600 = vmatprep.subr.mxu0 0.0
    %601 = vmatpush1.msra.mxu0 0.0
    %602 = vmatprep.subr.mxu0 0.0
    %603 = vmatpush1.msra.mxu0 0.0
    %604 = vmatprep.subr.mxu0 0.0
    %605 = vmatpush1.msra.mxu0 0.0
    %606 = vmatprep.subr.mxu0 0.0
    %607 = vmatpush1.msra.mxu0 0.0
    %608 = vmatprep.subr.mxu0 0.0
    %609 = vmatpush1.msra.mxu0 0.0
    %610 = vmatprep.subr.mxu0 0.0
    %611 = vmatpush1.msra.mxu0 0.0
    %612 = vmatprep.subr.mxu0 0.0
    %613 = vmatpush1.msra.mxu0 0.0
    %614 = vmatprep.mubr.f32.mxu0 0.0
    %615 = vmatmul.mubr.f32.gmra.mrb[0].mxu0 %v548
    %v616 = vpop.f32.mrb[0].mxu0
    %v617 = vadd.f32 0.0, %v616
    %v618 = vpop.f32.mrb[0].mxu0
    %619 = vdwg.mxu0
    %v620 = vadd.f32 %v217, %v617
    %v621 = vxor.u32 %v620, 2147483648
    %v622 = vmul.f32 %v621, 1.442695
    %v623 = vpow.pop %v622
    %v624 = vadd.f32 %v623, 1.0
    %v625 = vrcp.pop %v624
    %v626 = vmul.f32 1.0, %v625
    %v627 = vtanh.pop %v620
    %v628 = vmul.f32 %v626, %v538
    %630 = vrot.lane.b32.xlu0 %v627, 32
    %v631 = vpop.permute.xlu0 %630
    %v633 = vmul.f32 %v626, %v631
    %635 = vrot.lane.b32.xlu0 %v633, 32
    %v636 = vpop.permute.xlu0 %635
    %v638 = vadd.f32 %v628, %v636
    %v639 = vtanh.pop %v638
    %641 = vrot.lane.b32.xlu0 %v639, 32
    %v642 = vpop.permute.xlu0 %641
    %v644 = vmul.f32 %v626, %v642
    %646 = vrot.lane.b32.xlu0 %v644, 64
    %v647 = vpop.permute.xlu0 %646
    %v648 = vsel %vm242, %v647, 0
    %650 = vmatprep.subr.mxu0 0.0
    %651 = vmatpush1.msra.mxu0 %v99
    %652 = vmatprep.subr.mxu0 0.0
    %653 = vmatpush1.msra.mxu0 %v100
    %654 = vmatprep.subr.mxu0 0.0
    %655 = vmatpush1.msra.mxu0 %v101
    %656 = vmatprep.subr.mxu0 0.0
    %657 = vmatpush1.msra.mxu0 %v102
    %658 = vmatprep.subr.mxu0 0.0
    %659 = vmatpush1.msra.mxu0 0.0
    %660 = vmatprep.subr.mxu0 0.0
    %661 = vmatpush1.msra.mxu0 0.0
    %662 = vmatprep.subr.mxu0 0.0
    %663 = vmatpush1.msra.mxu0 0.0
    %664 = vmatprep.subr.mxu0 0.0
    %665 = vmatpush1.msra.mxu0 0.0
    %666 = vmatprep.subr.mxu0 0.0
    %667 = vmatpush1.msra.mxu0 0.0
    %668 = vmatprep.subr.mxu0 0.0
    %669 = vmatpush1.msra.mxu0 0.0
    %670 = vmatprep.subr.mxu0 0.0
    %671 = vmatpush1.msra.mxu0 0.0
    %672 = vmatprep.subr.mxu0 0.0
    %673 = vmatpush1.msra.mxu0 0.0
    %674 = vmatprep.subr.mxu0 0.0
    %675 = vmatpush1.msra.mxu0 0.0
    %676 = vmatprep.subr.mxu0 0.0
    %677 = vmatpush1.msra.mxu0 0.0
    %678 = vmatprep.subr.mxu0 0.0
    %679 = vmatpush1.msra.mxu0 0.0
    %680 = vmatprep.subr.mxu0 0.0
    %681 = vmatpush1.msra.mxu0 0.0
    %682 = vmatprep.subr.mxu0 0.0
    %683 = vmatpush1.msra.mxu0 0.0
    %684 = vmatprep.subr.mxu0 0.0
    %685 = vmatpush1.msra.mxu0 0.0
    %686 = vmatprep.subr.mxu0 0.0
    %687 = vmatpush1.msra.mxu0 0.0
    %688 = vmatprep.subr.mxu0 0.0
    %689 = vmatpush1.msra.mxu0 0.0
    %690 = vmatprep.subr.mxu0 0.0
    %691 = vmatpush1.msra.mxu0 0.0
    %692 = vmatprep.subr.mxu0 0.0
    %693 = vmatpush1.msra.mxu0 0.0
    %694 = vmatprep.subr.mxu0 0.0
    %695 = vmatpush1.msra.mxu0 0.0
    %696 = vmatprep.subr.mxu0 0.0
    %697 = vmatpush1.msra.mxu0 0.0
    %698 = vmatprep.subr.mxu0 0.0
    %699 = vmatpush1.msra.mxu0 0.0
    %700 = vmatprep.subr.mxu0 0.0
    %701 = vmatpush1.msra.mxu0 0.0
    %702 = vmatprep.subr.mxu0 0.0
    %703 = vmatpush1.msra.mxu0 0.0
    %704 = vmatprep.subr.mxu0 0.0
    %705 = vmatpush1.msra.mxu0 0.0
    %706 = vmatprep.subr.mxu0 0.0
    %707 = vmatpush1.msra.mxu0 0.0
    %708 = vmatprep.subr.mxu0 0.0
    %709 = vmatpush1.msra.mxu0 0.0
    %710 = vmatprep.subr.mxu0 0.0
    %711 = vmatpush1.msra.mxu0 0.0
    %712 = vmatprep.subr.mxu0 0.0
    %713 = vmatpush1.msra.mxu0 0.0
    %714 = vmatprep.mubr.f32.mxu0 0.0
    %715 = vmatmul.mubr.f32.gmra.mrb[0].mxu0 %v648
    %v716 = vpop.f32.mrb[0].mxu0
    %v717 = vadd.f32 0.0, %v716
    %v718 = vpop.f32.mrb[0].mxu0
    %719 = vdwg.mxu0
    %v720 = vadd.f32 %v222, %v717
    %v721 = vxor.u32 %v720, 2147483648
    %v722 = vmul.f32 %v721, 1.442695
    %v723 = vpow.pop %v722
    %v724 = vadd.f32 %v723, 1.0
    %v725 = vrcp.pop %v724
    %v726 = vmul.f32 1.0, %v725
    %v727 = vtanh.pop %v720
    %v728 = vmul.f32 %v726, %v638
    %730 = vrot.lane.b32.xlu0 %v727, 32
    %v731 = vpop.permute.xlu0 %730
    %v733 = vmul.f32 %v726, %v731
    %735 = vrot.lane.b32.xlu0 %v733, 32
    %v736 = vpop.permute.xlu0 %735
    %v738 = vadd.f32 %v728, %v736
    %v739 = vtanh.pop %v738
    %741 = vrot.lane.b32.xlu0 %v739, 32
    %v742 = vpop.permute.xlu0 %741
    %v744 = vmul.f32 %v726, %v742
    %746 = vrot.lane.b32.xlu0 %v744, 64
    %v747 = vpop.permute.xlu0 %746
    %v748 = vsel %vm242, %v747, 0
    %750 = vmatprep.subr.mxu0 0.0
    %751 = vmatpush1.msra.mxu0 %v99
    %752 = vmatprep.subr.mxu0 0.0
    %753 = vmatpush1.msra.mxu0 %v100
    %754 = vmatprep.subr.mxu0 0.0
    %755 = vmatpush1.msra.mxu0 %v101
    %756 = vmatprep.subr.mxu0 0.0
    %757 = vmatpush1.msra.mxu0 %v102
    %758 = vmatprep.subr.mxu0 0.0
    %759 = vmatpush1.msra.mxu0 0.0
    %760 = vmatprep.subr.mxu0 0.0
    %761 = vmatpush1.msra.mxu0 0.0
    %762 = vmatprep.subr.mxu0 0.0
    %763 = vmatpush1.msra.mxu0 0.0
    %764 = vmatprep.subr.mxu0 0.0
    %765 = vmatpush1.msra.mxu0 0.0
    %766 = vmatprep.subr.mxu0 0.0
    %767 = vmatpush1.msra.mxu0 0.0
    %768 = vmatprep.subr.mxu0 0.0
    %769 = vmatpush1.msra.mxu0 0.0
    %770 = vmatprep.subr.mxu0 0.0
    %771 = vmatpush1.msra.mxu0 0.0
    %772 = vmatprep.subr.mxu0 0.0
    %773 = vmatpush1.msra.mxu0 0.0
    %774 = vmatprep.subr.mxu0 0.0
    %775 = vmatpush1.msra.mxu0 0.0
    %776 = vmatprep.subr.mxu0 0.0
    %777 = vmatpush1.msra.mxu0 0.0
    %778 = vmatprep.subr.mxu0 0.0
    %779 = vmatpush1.msra.mxu0 0.0
    %780 = vmatprep.subr.mxu0 0.0
    %781 = vmatpush1.msra.mxu0 0.0
    %782 = vmatprep.subr.mxu0 0.0
    %783 = vmatpush1.msra.mxu0 0.0
    %784 = vmatprep.subr.mxu0 0.0
    %785 = vmatpush1.msra.mxu0 0.0
    %786 = vmatprep.subr.mxu0 0.0
    %787 = vmatpush1.msra.mxu0 0.0
    %788 = vmatprep.subr.mxu0 0.0
    %789 = vmatpush1.msra.mxu0 0.0
    %790 = vmatprep.subr.mxu0 0.0
    %791 = vmatpush1.msra.mxu0 0.0
    %792 = vmatprep.subr.mxu0 0.0
    %793 = vmatpush1.msra.mxu0 0.0
    %794 = vmatprep.subr.mxu0 0.0
    %795 = vmatpush1.msra.mxu0 0.0
    %796 = vmatprep.subr.mxu0 0.0
    %797 = vmatpush1.msra.mxu0 0.0
    %798 = vmatprep.subr.mxu0 0.0
    %799 = vmatpush1.msra.mxu0 0.0
    %800 = vmatprep.subr.mxu0 0.0
    %801 = vmatpush1.msra.mxu0 0.0
    %802 = vmatprep.subr.mxu0 0.0
    %803 = vmatpush1.msra.mxu0 0.0
    %804 = vmatprep.subr.mxu0 0.0
    %805 = vmatpush1.msra.mxu0 0.0
    %806 = vmatprep.subr.mxu0 0.0
    %807 = vmatpush1.msra.mxu0 0.0
    %808 = vmatprep.subr.mxu0 0.0
    %809 = vmatpush1.msra.mxu0 0.0
    %810 = vmatprep.subr.mxu0 0.0
    %811 = vmatpush1.msra.mxu0 0.0
    %812 = vmatprep.subr.mxu0 0.0
    %813 = vmatpush1.msra.mxu0 0.0
    %814 = vmatprep.mubr.f32.mxu0 0.0
    %815 = vmatmul.mubr.f32.gmra.mrb[0].mxu0 %v748
    %v816 = vpop.f32.mrb[0].mxu0
    %v817 = vadd.f32 0.0, %v816
    %v818 = vpop.f32.mrb[0].mxu0
    %819 = vdwg.mxu0
    %v820 = vadd.f32 %v227, %v817
    %v821 = vxor.u32 %v820, 2147483648
    %v822 = vmul.f32 %v821, 1.442695
    %v823 = vpow.pop %v822
    %v824 = vadd.f32 %v823, 1.0
    %v825 = vrcp.pop %v824
    %v826 = vmul.f32 1.0, %v825
    %v827 = vtanh.pop %v820
    %v828 = vmul.f32 %v826, %v738
    %830 = vrot.lane.b32.xlu0 %v827, 32
    %v831 = vpop.permute.xlu0 %830
    %v833 = vmul.f32 %v826, %v831
    %835 = vrot.lane.b32.xlu0 %v833, 32
    %v836 = vpop.permute.xlu0 %835
    %v838 = vadd.f32 %v828, %v836
    %v839 = vtanh.pop %v838
    %841 = vrot.lane.b32.xlu0 %v839, 32
    %v842 = vpop.permute.xlu0 %841
    %v844 = vmul.f32 %v826, %v842
    %846 = vrot.lane.b32.xlu0 %v844, 64
    %v847 = vpop.permute.xlu0 %846
    %v848 = vsel %vm242, %v847, 0
    %850 = vmatprep.subr.mxu0 0.0
    %851 = vmatpush1.msra.mxu0 %v99
    %852 = vmatprep.subr.mxu0 0.0
    %853 = vmatpush1.msra.mxu0 %v100
    %854 = vmatprep.subr.mxu0 0.0
    %855 = vmatpush1.msra.mxu0 %v101
    %856 = vmatprep.subr.mxu0 0.0
    %857 = vmatpush1.msra.mxu0 %v102
    %858 = vmatprep.subr.mxu0 0.0
    %859 = vmatpush1.msra.mxu0 0.0
    %860 = vmatprep.subr.mxu0 0.0
    %861 = vmatpush1.msra.mxu0 0.0
    %862 = vmatprep.subr.mxu0 0.0
    %863 = vmatpush1.msra.mxu0 0.0
    %864 = vmatprep.subr.mxu0 0.0
    %865 = vmatpush1.msra.mxu0 0.0
    %866 = vmatprep.subr.mxu0 0.0
    %867 = vmatpush1.msra.mxu0 0.0
    %868 = vmatprep.subr.mxu0 0.0
    %869 = vmatpush1.msra.mxu0 0.0
    %870 = vmatprep.subr.mxu0 0.0
    %871 = vmatpush1.msra.mxu0 0.0
    %872 = vmatprep.subr.mxu0 0.0
    %873 = vmatpush1.msra.mxu0 0.0
    %874 = vmatprep.subr.mxu0 0.0
    %875 = vmatpush1.msra.mxu0 0.0
    %876 = vmatprep.subr.mxu0 0.0
    %877 = vmatpush1.msra.mxu0 0.0
    %878 = vmatprep.subr.mxu0 0.0
    %879 = vmatpush1.msra.mxu0 0.0
    %880 = vmatprep.subr.mxu0 0.0
    %881 = vmatpush1.msra.mxu0 0.0
    %882 = vmatprep.subr.mxu0 0.0
    %883 = vmatpush1.msra.mxu0 0.0
    %884 = vmatprep.subr.mxu0 0.0
    %885 = vmatpush1.msra.mxu0 0.0
    %886 = vmatprep.subr.mxu0 0.0
    %887 = vmatpush1.msra.mxu0 0.0
    %888 = vmatprep.subr.mxu0 0.0
    %889 = vmatpush1.msra.mxu0 0.0
    %890 = vmatprep.subr.mxu0 0.0
    %891 = vmatpush1.msra.mxu0 0.0
    %892 = vmatprep.subr.mxu0 0.0
    %893 = vmatpush1.msra.mxu0 0.0
    %894 = vmatprep.subr.mxu0 0.0
    %895 = vmatpush1.msra.mxu0 0.0
    %896 = vmatprep.subr.mxu0 0.0
    %897 = vmatpush1.msra.mxu0 0.0
    %898 = vmatprep.subr.mxu0 0.0
    %899 = vmatpush1.msra.mxu0 0.0
    %900 = vmatprep.subr.mxu0 0.0
    %901 = vmatpush1.msra.mxu0 0.0
    %902 = vmatprep.subr.mxu0 0.0
    %903 = vmatpush1.msra.mxu0 0.0
    %904 = vmatprep.subr.mxu0 0.0
    %905 = vmatpush1.msra.mxu0 0.0
    %906 = vmatprep.subr.mxu0 0.0
    %907 = vmatpush1.msra.mxu0 0.0
    %908 = vmatprep.subr.mxu0 0.0
    %909 = vmatpush1.msra.mxu0 0.0
    %910 = vmatprep.subr.mxu0 0.0
    %911 = vmatpush1.msra.mxu0 0.0
    %912 = vmatprep.subr.mxu0 0.0
    %913 = vmatpush1.msra.mxu0 0.0
    %914 = vmatprep.mubr.f32.mxu0 0.0
    %915 = vmatmul.mubr.f32.gmra.mrb[0].mxu0 %v848
    %v916 = vpop.f32.mrb[0].mxu0
    %v917 = vadd.f32 0.0, %v916
    %v918 = vpop.f32.mrb[0].mxu0
    %919 = vdwg.mxu0
    %v920 = vadd.f32 %v232, %v917
    %v921 = vxor.u32 %v920, 2147483648
    %v922 = vmul.f32 %v921, 1.442695
    %v923 = vpow.pop %v922
    %v924 = vadd.f32 %v923, 1.0
    %v925 = vrcp.pop %v924
    %v926 = vmul.f32 1.0, %v925
    %v927 = vtanh.pop %v920
    %v928 = vmul.f32 %v926, %v838
    %930 = vrot.lane.b32.xlu0 %v927, 32
    %v931 = vpop.permute.xlu0 %930
    %v933 = vmul.f32 %v926, %v931
    %935 = vrot.lane.b32.xlu0 %v933, 32
    %v936 = vpop.permute.xlu0 %935
    %v938 = vadd.f32 %v928, %v936
    %v939 = vtanh.pop %v938
    %941 = vrot.lane.b32.xlu0 %v939, 32
    %v942 = vpop.permute.xlu0 %941
    %v944 = vmul.f32 %v926, %v942
    %946 = vrot.lane.b32.xlu0 %v944, 64
    %v947 = vpop.permute.xlu0 %946
    %v948 = vsel %vm242, %v947, 0
    %950 = vmatprep.subr.mxu0 0.0
    %951 = vmatpush1.msra.mxu0 %v99
    %952 = vmatprep.subr.mxu0 0.0
    %953 = vmatpush1.msra.mxu0 %v100
    %954 = vmatprep.subr.mxu0 0.0
    %955 = vmatpush1.msra.mxu0 %v101
    %956 = vmatprep.subr.mxu0 0.0
    %957 = vmatpush1.msra.mxu0 %v102
    %958 = vmatprep.subr.mxu0 0.0
    %959 = vmatpush1.msra.mxu0 0.0
    %960 = vmatprep.subr.mxu0 0.0
    %961 = vmatpush1.msra.mxu0 0.0
    %962 = vmatprep.subr.mxu0 0.0
    %963 = vmatpush1.msra.mxu0 0.0
    %964 = vmatprep.subr.mxu0 0.0
    %965 = vmatpush1.msra.mxu0 0.0
    %966 = vmatprep.subr.mxu0 0.0
    %967 = vmatpush1.msra.mxu0 0.0
    %968 = vmatprep.subr.mxu0 0.0
    %969 = vmatpush1.msra.mxu0 0.0
    %970 = vmatprep.subr.mxu0 0.0
    %971 = vmatpush1.msra.mxu0 0.0
    %972 = vmatprep.subr.mxu0 0.0
    %973 = vmatpush1.msra.mxu0 0.0
    %974 = vmatprep.subr.mxu0 0.0
    %975 = vmatpush1.msra.mxu0 0.0
    %976 = vmatprep.subr.mxu0 0.0
    %977 = vmatpush1.msra.mxu0 0.0
    %978 = vmatprep.subr.mxu0 0.0
    %979 = vmatpush1.msra.mxu0 0.0
    %980 = vmatprep.subr.mxu0 0.0
    %981 = vmatpush1.msra.mxu0 0.0
    %982 = vmatprep.subr.mxu0 0.0
    %983 = vmatpush1.msra.mxu0 0.0
    %984 = vmatprep.subr.mxu0 0.0
    %985 = vmatpush1.msra.mxu0 0.0
    %986 = vmatprep.subr.mxu0 0.0
    %987 = vmatpush1.msra.mxu0 0.0
    %988 = vmatprep.subr.mxu0 0.0
    %989 = vmatpush1.msra.mxu0 0.0
    %990 = vmatprep.subr.mxu0 0.0
    %991 = vmatpush1.msra.mxu0 0.0
    %992 = vmatprep.subr.mxu0 0.0
    %993 = vmatpush1.msra.mxu0 0.0
    %994 = vmatprep.subr.mxu0 0.0
    %995 = vmatpush1.msra.mxu0 0.0
    %996 = vmatprep.subr.mxu0 0.0
    %997 = vmatpush1.msra.mxu0 0.0
    %998 = vmatprep.subr.mxu0 0.0
    %999 = vmatpush1.msra.mxu0 0.0
    %1000 = vmatprep.subr.mxu0 0.0
    %1001 = vmatpush1.msra.mxu0 0.0
    %1002 = vmatprep.subr.mxu0 0.0
    %1003 = vmatpush1.msra.mxu0 0.0
    %1004 = vmatprep.subr.mxu0 0.0
    %1005 = vmatpush1.msra.mxu0 0.0
    %1006 = vmatprep.subr.mxu0 0.0
    %1007 = vmatpush1.msra.mxu0 0.0
    %1008 = vmatprep.subr.mxu0 0.0
    %1009 = vmatpush1.msra.mxu0 0.0
    %1010 = vmatprep.subr.mxu0 0.0
    %1011 = vmatpush1.msra.mxu0 0.0
    %1012 = vmatprep.subr.mxu0 0.0
    %1013 = vmatpush1.msra.mxu0 0.0
    %1014 = vmatprep.mubr.f32.mxu0 0.0
    %1015 = vmatmul.mubr.f32.gmra.mrb[0].mxu0 %v948
    %v1016 = vpop.f32.mrb[0].mxu0
    %v1017 = vadd.f32 0.0, %v1016
    %v1018 = vpop.f32.mrb[0].mxu0
    %1019 = vdwg.mxu0
    %v1020 = vadd.f32 %v237, %v1017
    %v1021 = vxor.u32 %v1020, 2147483648
    %v1022 = vmul.f32 %v1021, 1.442695
    %v1023 = vpow.pop %v1022
    %v1024 = vadd.f32 %v1023, 1.0
    %v1025 = vrcp.pop %v1024
    %v1026 = vmul.f32 1.0, %v1025
    %v1027 = vtanh.pop %v1020
    %v1028 = vmul.f32 %v1026, %v938
    %1030 = vrot.lane.b32.xlu0 %v1027, 32
    %v1031 = vpop.permute.xlu0 %1030
    %v1033 = vmul.f32 %v1026, %v1031
    %1035 = vrot.lane.b32.xlu0 %v1033, 32
    %v1036 = vpop.permute.xlu0 %1035
    %v1038 = vadd.f32 %v1028, %v1036
    %v1039 = vtanh.pop %v1038
    %1041 = vrot.lane.b32.xlu0 %v1039, 32
    %v1042 = vpop.permute.xlu0 %1041
    %v1044 = vmul.f32 %v1026, %v1042
    %1046 = vrot.lane.b32.xlu0 %v1044, 64
    %v1047 = vpop.permute.xlu0 %1046
    %1049 = vst.msk [vmem:[#allocation11] sm:$0xff] %vm242, %v1047
    %1051 = vrot.lane.b32.xlu0 %v1038, 96
    %v1052 = vpop.permute.xlu0 %1051
    %1054 = vst.msk [vmem:[#allocation13] sm:$0xff] %vm242, %v1052
    %v1055 = vld [vmem:[#allocation5] sm:$0xff]
    %v1056 = vld [vmem:[#allocation5 + $0x8] sm:$0xff]
    %v1057 = vld [vmem:[#allocation5 + $0x10] sm:$0xff]
    %v1058 = vld [vmem:[#allocation5 + $0x18] sm:$0xff]
    %s1059 = scalar_lea.vmem %s3, 32
    %v1060 = vld [vmem:[%s1059] sm:$0xff]
    %v1061 = vld [vmem:[%s1059 + $0x8] sm:$0xff]
    %v1062 = vld [vmem:[%s1059 + $0x10] sm:$0xff]
    %v1063 = vld [vmem:[%s1059 + $0x18] sm:$0xff]
    %s1064 = scalar_lea.vmem %s4, 1
    %v1065 = vld [vmem:[%s1064] sm:$0x1]
    %v1067 = vlaneseq
    %v1068 = vshrl.u32 %v1067, 7
    %v1069 = vsub.s32 0, %v1068
    %v1070 = vrot.slane %v1065, %v1069
    %v1072 = vsel %vm242, %v1047, 0
    %1074 = vmatprep.subr.mxu0 0.0
    %1075 = vmatpush1.msra.mxu0 %v1055
    %1076 = vmatprep.subr.mxu0 0.0
    %1077 = vmatpush1.msra.mxu0 %v1056
    %1078 = vmatprep.subr.mxu0 0.0
    %1079 = vmatpush1.msra.mxu0 %v1057
    %1080 = vmatprep.subr.mxu0 0.0
    %1081 = vmatpush1.msra.mxu0 %v1058
    %1082 = vmatprep.subr.mxu0 0.0
    %1083 = vmatpush1.msra.mxu0 0.0
    %1084 = vmatprep.subr.mxu0 0.0
    %1085 = vmatpush1.msra.mxu0 0.0
    %1086 = vmatprep.subr.mxu0 0.0
    %1087 = vmatpush1.msra.mxu0 0.0
    %1088 = vmatprep.subr.mxu0 0.0
    %1089 = vmatpush1.msra.mxu0 0.0
    %1090 = vmatprep.subr.mxu0 0.0
    %1091 = vmatpush1.msra.mxu0 0.0
    %1092 = vmatprep.subr.mxu0 0.0
    %1093 = vmatpush1.msra.mxu0 0.0
    %1094 = vmatprep.subr.mxu0 0.0
    %1095 = vmatpush1.msra.mxu0 0.0
    %1096 = vmatprep.subr.mxu0 0.0
    %1097 = vmatpush1.msra.mxu0 0.0
    %1098 = vmatprep.subr.mxu0 0.0
    %1099 = vmatpush1.msra.mxu0 0.0
    %1100 = vmatprep.subr.mxu0 0.0
    %1101 = vmatpush1.msra.mxu0 0.0
    %1102 = vmatprep.subr.mxu0 0.0
    %1103 = vmatpush1.msra.mxu0 0.0
    %1104 = vmatprep.subr.mxu0 0.0
    %1105 = vmatpush1.msra.mxu0 0.0
    %1106 = vmatprep.subr.mxu0 0.0
    %1107 = vmatpush1.msra.mxu0 0.0
    %1108 = vmatprep.subr.mxu0 0.0
    %1109 = vmatpush1.msra.mxu0 0.0
    %1110 = vmatprep.subr.mxu0 0.0
    %1111 = vmatpush1.msra.mxu0 0.0
    %1112 = vmatprep.subr.mxu0 0.0
    %1113 = vmatpush1.msra.mxu0 0.0
    %1114 = vmatprep.subr.mxu0 0.0
    %1115 = vmatpush1.msra.mxu0 0.0
    %1116 = vmatprep.subr.mxu0 0.0
    %1117 = vmatpush1.msra.mxu0 0.0
    %1118 = vmatprep.subr.mxu0 0.0
    %1119 = vmatpush1.msra.mxu0 0.0
    %1120 = vmatprep.subr.mxu0 0.0
    %1121 = vmatpush1.msra.mxu0 0.0
    %1122 = vmatprep.subr.mxu0 0.0
    %1123 = vmatpush1.msra.mxu0 0.0
    %1124 = vmatprep.subr.mxu0 0.0
    %1125 = vmatpush1.msra.mxu0 0.0
    %1126 = vmatprep.subr.mxu0 0.0
    %1127 = vmatpush1.msra.mxu0 0.0
    %1128 = vmatprep.subr.mxu0 0.0
    %1129 = vmatpush1.msra.mxu0 0.0
    %1130 = vmatprep.subr.mxu0 0.0
    %1131 = vmatpush1.msra.mxu0 0.0
    %1132 = vmatprep.subr.mxu0 0.0
    %1133 = vmatpush1.msra.mxu0 0.0
    %1134 = vmatprep.subr.mxu0 0.0
    %1135 = vmatpush1.msra.mxu0 0.0
    %1136 = vmatprep.subr.mxu0 0.0
    %1137 = vmatpush1.msra.mxu0 0.0
    %1138 = vmatprep.mubr.f32.mxu0 0.0
    %1139 = vmatmul.mubr.f32.gmra.mrb[0].mxu0 %v348
    %v1140 = vpop.f32.mrb[0].mxu0
    %v1141 = vadd.f32 %v1070, %v1140
    %v1142 = vpop.f32.mrb[0].mxu0
    %1143 = vmatprep.mubr.f32.mxu0 0.0
    %1144 = vmatmul.mubr.f32.gmra.mrb[0].mxu0 %v448
    %v1145 = vpop.f32.mrb[0].mxu0
    %v1146 = vadd.f32 %v1070, %v1145
    %v1147 = vpop.f32.mrb[0].mxu0
    %1148 = vmatprep.mubr.f32.mxu0 0.0
    %1149 = vmatmul.mubr.f32.gmra.mrb[0].mxu0 %v548
    %v1150 = vpop.f32.mrb[0].mxu0
    %v1151 = vadd.f32 %v1070, %v1150
    %v1152 = vpop.f32.mrb[0].mxu0
    %1153 = vmatprep.mubr.f32.mxu0 0.0
    %1154 = vmatmul.mubr.f32.gmra.mrb[0].mxu0 %v648
    %v1155 = vpop.f32.mrb[0].mxu0
    %v1156 = vadd.f32 %v1070, %v1155
    %v1157 = vpop.f32.mrb[0].mxu0
    %1158 = vmatprep.mubr.f32.mxu0 0.0
    %1159 = vmatmul.mubr.f32.gmra.mrb[0].mxu0 %v748
    %v1160 = vpop.f32.mrb[0].mxu0
    %v1161 = vadd.f32 %v1070, %v1160
    %v1162 = vpop.f32.mrb[0].mxu0
    %1163 = vmatprep.mubr.f32.mxu0 0.0
    %1164 = vmatmul.mubr.f32.gmra.mrb[0].mxu0 %v848
    %v1165 = vpop.f32.mrb[0].mxu0
    %v1166 = vadd.f32 %v1070, %v1165
    %v1167 = vpop.f32.mrb[0].mxu0
    %1168 = vmatprep.mubr.f32.mxu0 0.0
    %1169 = vmatmul.mubr.f32.gmra.mrb[0].mxu0 %v948
    %v1170 = vpop.f32.mrb[0].mxu0
    %v1171 = vadd.f32 %v1070, %v1170
    %v1172 = vpop.f32.mrb[0].mxu0
    %1173 = vmatprep.mubr.f32.mxu0 0.0
    %1174 = vmatmul.mubr.f32.gmra.mrb[0].mxu0 %v1072
    %v1175 = vpop.f32.mrb[0].mxu0
    %v1176 = vadd.f32 %v1070, %v1175
    %v1177 = vpop.f32.mrb[0].mxu0
    %1178 = vdwg.mxu0
    %s1179 = scalar_lea.vmem [#allocation7], 8
    %v1180 = vld [vmem:[%s1179] sm:$0xff]
    %s1181 = scalar_lea.vmem [#allocation8], 8
    %v1182 = vld [vmem:[%s1181] sm:$0xff]
    %v1184 = vsel %vm242, %v1180, 0
    %1186 = vmatprep.subr.mxu0 0.0
    %1187 = vmatpush1.msra.mxu0 %v1060
    %1188 = vmatprep.subr.mxu0 0.0
    %1189 = vmatpush1.msra.mxu0 %v1061
    %1190 = vmatprep.subr.mxu0 0.0
    %1191 = vmatpush1.msra.mxu0 %v1062
    %1192 = vmatprep.subr.mxu0 0.0
    %1193 = vmatpush1.msra.mxu0 %v1063
    %1194 = vmatprep.subr.mxu0 0.0
    %1195 = vmatpush1.msra.mxu0 0.0
    %1196 = vmatprep.subr.mxu0 0.0
    %1197 = vmatpush1.msra.mxu0 0.0
    %1198 = vmatprep.subr.mxu0 0.0
    %1199 = vmatpush1.msra.mxu0 0.0
    %1200 = vmatprep.subr.mxu0 0.0
    %1201 = vmatpush1.msra.mxu0 0.0
    %1202 = vmatprep.subr.mxu0 0.0
    %1203 = vmatpush1.msra.mxu0 0.0
    %1204 = vmatprep.subr.mxu0 0.0
    %1205 = vmatpush1.msra.mxu0 0.0
    %1206 = vmatprep.subr.mxu0 0.0
    %1207 = vmatpush1.msra.mxu0 0.0
    %1208 = vmatprep.subr.mxu0 0.0
    %1209 = vmatpush1.msra.mxu0 0.0
    %1210 = vmatprep.subr.mxu0 0.0
    %1211 = vmatpush1.msra.mxu0 0.0
    %1212 = vmatprep.subr.mxu0 0.0
    %1213 = vmatpush1.msra.mxu0 0.0
    %1214 = vmatprep.subr.mxu0 0.0
    %1215 = vmatpush1.msra.mxu0 0.0
    %1216 = vmatprep.subr.mxu0 0.0
    %1217 = vmatpush1.msra.mxu0 0.0
    %1218 = vmatprep.subr.mxu0 0.0
    %1219 = vmatpush1.msra.mxu0 0.0
    %1220 = vmatprep.subr.mxu0 0.0
    %1221 = vmatpush1.msra.mxu0 0.0
    %1222 = vmatprep.subr.mxu0 0.0
    %1223 = vmatpush1.msra.mxu0 0.0
    %1224 = vmatprep.subr.mxu0 0.0
    %1225 = vmatpush1.msra.mxu0 0.0
    %1226 = vmatprep.subr.mxu0 0.0
    %1227 = vmatpush1.msra.mxu0 0.0
    %1228 = vmatprep.subr.mxu0 0.0
    %1229 = vmatpush1.msra.mxu0 0.0
    %1230 = vmatprep.subr.mxu0 0.0
    %1231 = vmatpush1.msra.mxu0 0.0
    %1232 = vmatprep.subr.mxu0 0.0
    %1233 = vmatpush1.msra.mxu0 0.0
    %1234 = vmatprep.subr.mxu0 0.0
    %1235 = vmatpush1.msra.mxu0 0.0
    %1236 = vmatprep.subr.mxu0 0.0
    %1237 = vmatpush1.msra.mxu0 0.0
    %1238 = vmatprep.subr.mxu0 0.0
    %1239 = vmatpush1.msra.mxu0 0.0
    %1240 = vmatprep.subr.mxu0 0.0
    %1241 = vmatpush1.msra.mxu0 0.0
    %1242 = vmatprep.subr.mxu0 0.0
    %1243 = vmatpush1.msra.mxu0 0.0
    %1244 = vmatprep.subr.mxu0 0.0
    %1245 = vmatpush1.msra.mxu0 0.0
    %1246 = vmatprep.subr.mxu0 0.0
    %1247 = vmatpush1.msra.mxu0 0.0
    %1248 = vmatprep.subr.mxu0 0.0
    %1249 = vmatpush1.msra.mxu0 0.0
    %1250 = vmatprep.mubr.f32.mxu0 0.0
    %1251 = vmatmul.mubr.f32.gmra.mrb[0].mxu0 %v1184
    %v1252 = vpop.f32.mrb[0].mxu0
    %v1253 = vadd.f32 0.0, %v1252
    %v1254 = vpop.f32.mrb[0].mxu0
    %1255 = vdwg.mxu0
    %v1256 = vadd.f32 %v1141, %v1253
    %v1257 = vxor.u32 %v1256, 2147483648
    %v1258 = vmul.f32 %v1257, 1.442695
    %v1259 = vpow.pop %v1258
    %v1260 = vadd.f32 %v1259, 1.0
    %v1261 = vrcp.pop %v1260
    %v1262 = vmul.f32 1.0, %v1261
    %v1263 = vtanh.pop %v1256
    %1265 = vrot.lane.b32.xlu0 %v1182, 32
    %v1266 = vpop.permute.xlu0 %1265
    %v1268 = vmul.f32 %v1262, %v1266
    %1270 = vrot.lane.b32.xlu0 %v1263, 32
    %v1271 = vpop.permute.xlu0 %1270
    %v1273 = vmul.f32 %v1262, %v1271
    %1275 = vrot.lane.b32.xlu0 %v1273, 32
    %v1276 = vpop.permute.xlu0 %1275
    %v1278 = vadd.f32 %v1268, %v1276
    %v1279 = vtanh.pop %v1278
    %1281 = vrot.lane.b32.xlu0 %v1279, 32
    %v1282 = vpop.permute.xlu0 %1281
    %v1284 = vmul.f32 %v1262, %v1282
    %1286 = vrot.lane.b32.xlu0 %v1284, 64
    %v1287 = vpop.permute.xlu0 %1286
    %v1288 = vsel %vm242, %v1287, 0
    %1290 = vmatprep.subr.mxu0 0.0
    %1291 = vmatpush1.msra.mxu0 %v1060
    %1292 = vmatprep.subr.mxu0 0.0
    %1293 = vmatpush1.msra.mxu0 %v1061
    %1294 = vmatprep.subr.mxu0 0.0
    %1295 = vmatpush1.msra.mxu0 %v1062
    %1296 = vmatprep.subr.mxu0 0.0
    %1297 = vmatpush1.msra.mxu0 %v1063
    %1298 = vmatprep.subr.mxu0 0.0
    %1299 = vmatpush1.msra.mxu0 0.0
    %1300 = vmatprep.subr.mxu0 0.0
    %1301 = vmatpush1.msra.mxu0 0.0
    %1302 = vmatprep.subr.mxu0 0.0
    %1303 = vmatpush1.msra.mxu0 0.0
    %1304 = vmatprep.subr.mxu0 0.0
    %1305 = vmatpush1.msra.mxu0 0.0
    %1306 = vmatprep.subr.mxu0 0.0
    %1307 = vmatpush1.msra.mxu0 0.0
    %1308 = vmatprep.subr.mxu0 0.0
    %1309 = vmatpush1.msra.mxu0 0.0
    %1310 = vmatprep.subr.mxu0 0.0
    %1311 = vmatpush1.msra.mxu0 0.0
    %1312 = vmatprep.subr.mxu0 0.0
    %1313 = vmatpush1.msra.mxu0 0.0
    %1314 = vmatprep.subr.mxu0 0.0
    %1315 = vmatpush1.msra.mxu0 0.0
    %1316 = vmatprep.subr.mxu0 0.0
    %1317 = vmatpush1.msra.mxu0 0.0
    %1318 = vmatprep.subr.mxu0 0.0
    %1319 = vmatpush1.msra.mxu0 0.0
    %1320 = vmatprep.subr.mxu0 0.0
    %1321 = vmatpush1.msra.mxu0 0.0
    %1322 = vmatprep.subr.mxu0 0.0
    %1323 = vmatpush1.msra.mxu0 0.0
    %1324 = vmatprep.subr.mxu0 0.0
    %1325 = vmatpush1.msra.mxu0 0.0
    %1326 = vmatprep.subr.mxu0 0.0
    %1327 = vmatpush1.msra.mxu0 0.0
    %1328 = vmatprep.subr.mxu0 0.0
    %1329 = vmatpush1.msra.mxu0 0.0
    %1330 = vmatprep.subr.mxu0 0.0
    %1331 = vmatpush1.msra.mxu0 0.0
    %1332 = vmatprep.subr.mxu0 0.0
    %1333 = vmatpush1.msra.mxu0 0.0
    %1334 = vmatprep.subr.mxu0 0.0
    %1335 = vmatpush1.msra.mxu0 0.0
    %1336 = vmatprep.subr.mxu0 0.0
    %1337 = vmatpush1.msra.mxu0 0.0
    %1338 = vmatprep.subr.mxu0 0.0
    %1339 = vmatpush1.msra.mxu0 0.0
    %1340 = vmatprep.subr.mxu0 0.0
    %1341 = vmatpush1.msra.mxu0 0.0
    %1342 = vmatprep.subr.mxu0 0.0
    %1343 = vmatpush1.msra.mxu0 0.0
    %1344 = vmatprep.subr.mxu0 0.0
    %1345 = vmatpush1.msra.mxu0 0.0
    %1346 = vmatprep.subr.mxu0 0.0
    %1347 = vmatpush1.msra.mxu0 0.0
    %1348 = vmatprep.subr.mxu0 0.0
    %1349 = vmatpush1.msra.mxu0 0.0
    %1350 = vmatprep.subr.mxu0 0.0
    %1351 = vmatpush1.msra.mxu0 0.0
    %1352 = vmatprep.subr.mxu0 0.0
    %1353 = vmatpush1.msra.mxu0 0.0
    %1354 = vmatprep.mubr.f32.mxu0 0.0
    %1355 = vmatmul.mubr.f32.gmra.mrb[0].mxu0 %v1288
    %v1356 = vpop.f32.mrb[0].mxu0
    %v1357 = vadd.f32 0.0, %v1356
    %v1358 = vpop.f32.mrb[0].mxu0
    %1359 = vdwg.mxu0
    %v1360 = vadd.f32 %v1146, %v1357
    %v1361 = vxor.u32 %v1360, 2147483648
    %v1362 = vmul.f32 %v1361, 1.442695
    %v1363 = vpow.pop %v1362
    %v1364 = vadd.f32 %v1363, 1.0
    %v1365 = vrcp.pop %v1364
    %v1366 = vmul.f32 1.0, %v1365
    %v1367 = vtanh.pop %v1360
    %v1368 = vmul.f32 %v1366, %v1278
    %1370 = vrot.lane.b32.xlu0 %v1367, 32
    %v1371 = vpop.permute.xlu0 %1370
    %v1373 = vmul.f32 %v1366, %v1371
    %1375 = vrot.lane.b32.xlu0 %v1373, 32
    %v1376 = vpop.permute.xlu0 %1375
    %v1378 = vadd.f32 %v1368, %v1376
    %v1379 = vtanh.pop %v1378
    %1381 = vrot.lane.b32.xlu0 %v1379, 32
    %v1382 = vpop.permute.xlu0 %1381
    %v1384 = vmul.f32 %v1366, %v1382
    %1386 = vrot.lane.b32.xlu0 %v1384, 64
    %v1387 = vpop.permute.xlu0 %1386
    %v1388 = vsel %vm242, %v1387, 0
    %1390 = vmatprep.subr.mxu0 0.0
    %1391 = vmatpush1.msra.mxu0 %v1060
    %1392 = vmatprep.subr.mxu0 0.0
    %1393 = vmatpush1.msra.mxu0 %v1061
    %1394 = vmatprep.subr.mxu0 0.0
    %1395 = vmatpush1.msra.mxu0 %v1062
    %1396 = vmatprep.subr.mxu0 0.0
    %1397 = vmatpush1.msra.mxu0 %v1063
    %1398 = vmatprep.subr.mxu0 0.0
    %1399 = vmatpush1.msra.mxu0 0.0
    %1400 = vmatprep.subr.mxu0 0.0
    %1401 = vmatpush1.msra.mxu0 0.0
    %1402 = vmatprep.subr.mxu0 0.0
    %1403 = vmatpush1.msra.mxu0 0.0
    %1404 = vmatprep.subr.mxu0 0.0
    %1405 = vmatpush1.msra.mxu0 0.0
    %1406 = vmatprep.subr.mxu0 0.0
    %1407 = vmatpush1.msra.mxu0 0.0
    %1408 = vmatprep.subr.mxu0 0.0
    %1409 = vmatpush1.msra.mxu0 0.0
    %1410 = vmatprep.subr.mxu0 0.0
    %1411 = vmatpush1.msra.mxu0 0.0
    %1412 = vmatprep.subr.mxu0 0.0
    %1413 = vmatpush1.msra.mxu0 0.0
    %1414 = vmatprep.subr.mxu0 0.0
    %1415 = vmatpush1.msra.mxu0 0.0
    %1416 = vmatprep.subr.mxu0 0.0
    %1417 = vmatpush1.msra.mxu0 0.0
    %1418 = vmatprep.subr.mxu0 0.0
    %1419 = vmatpush1.msra.mxu0 0.0
    %1420 = vmatprep.subr.mxu0 0.0
    %1421 = vmatpush1.msra.mxu0 0.0
    %1422 = vmatprep.subr.mxu0 0.0
    %1423 = vmatpush1.msra.mxu0 0.0
    %1424 = vmatprep.subr.mxu0 0.0
    %1425 = vmatpush1.msra.mxu0 0.0
    %1426 = vmatprep.subr.mxu0 0.0
    %1427 = vmatpush1.msra.mxu0 0.0
    %1428 = vmatprep.subr.mxu0 0.0
    %1429 = vmatpush1.msra.mxu0 0.0
    %1430 = vmatprep.subr.mxu0 0.0
    %1431 = vmatpush1.msra.mxu0 0.0
    %1432 = vmatprep.subr.mxu0 0.0
    %1433 = vmatpush1.msra.mxu0 0.0
    %1434 = vmatprep.subr.mxu0 0.0
    %1435 = vmatpush1.msra.mxu0 0.0
    %1436 = vmatprep.subr.mxu0 0.0
    %1437 = vmatpush1.msra.mxu0 0.0
    %1438 = vmatprep.subr.mxu0 0.0
    %1439 = vmatpush1.msra.mxu0 0.0
    %1440 = vmatprep.subr.mxu0 0.0
    %1441 = vmatpush1.msra.mxu0 0.0
    %1442 = vmatprep.subr.mxu0 0.0
    %1443 = vmatpush1.msra.mxu0 0.0
    %1444 = vmatprep.subr.mxu0 0.0
    %1445 = vmatpush1.msra.mxu0 0.0
    %1446 = vmatprep.subr.mxu0 0.0
    %1447 = vmatpush1.msra.mxu0 0.0
    %1448 = vmatprep.subr.mxu0 0.0
    %1449 = vmatpush1.msra.mxu0 0.0
    %1450 = vmatprep.subr.mxu0 0.0
    %1451 = vmatpush1.msra.mxu0 0.0
    %1452 = vmatprep.subr.mxu0 0.0
    %1453 = vmatpush1.msra.mxu0 0.0
    %1454 = vmatprep.mubr.f32.mxu0 0.0
    %1455 = vmatmul.mubr.f32.gmra.mrb[0].mxu0 %v1388
    %v1456 = vpop.f32.mrb[0].mxu0
    %v1457 = vadd.f32 0.0, %v1456
    %v1458 = vpop.f32.mrb[0].mxu0
    %1459 = vdwg.mxu0
    %v1460 = vadd.f32 %v1151, %v1457
    %v1461 = vxor.u32 %v1460, 2147483648
    %v1462 = vmul.f32 %v1461, 1.442695
    %v1463 = vpow.pop %v1462
    %v1464 = vadd.f32 %v1463, 1.0
    %v1465 = vrcp.pop %v1464
    %v1466 = vmul.f32 1.0, %v1465
    %v1467 = vtanh.pop %v1460
    %v1468 = vmul.f32 %v1466, %v1378
    %1470 = vrot.lane.b32.xlu0 %v1467, 32
    %v1471 = vpop.permute.xlu0 %1470
    %v1473 = vmul.f32 %v1466, %v1471
    %1475 = vrot.lane.b32.xlu0 %v1473, 32
    %v1476 = vpop.permute.xlu0 %1475
    %v1478 = vadd.f32 %v1468, %v1476
    %v1479 = vtanh.pop %v1478
    %1481 = vrot.lane.b32.xlu0 %v1479, 32
    %v1482 = vpop.permute.xlu0 %1481
    %v1484 = vmul.f32 %v1466, %v1482
    %1486 = vrot.lane.b32.xlu0 %v1484, 64
    %v1487 = vpop.permute.xlu0 %1486
    %v1488 = vsel %vm242, %v1487, 0
    %1490 = vmatprep.subr.mxu0 0.0
    %1491 = vmatpush1.msra.mxu0 %v1060
    %1492 = vmatprep.subr.mxu0 0.0
    %1493 = vmatpush1.msra.mxu0 %v1061
    %1494 = vmatprep.subr.mxu0 0.0
    %1495 = vmatpush1.msra.mxu0 %v1062
    %1496 = vmatprep.subr.mxu0 0.0
    %1497 = vmatpush1.msra.mxu0 %v1063
    %1498 = vmatprep.subr.mxu0 0.0
    %1499 = vmatpush1.msra.mxu0 0.0
    %1500 = vmatprep.subr.mxu0 0.0
    %1501 = vmatpush1.msra.mxu0 0.0
    %1502 = vmatprep.subr.mxu0 0.0
    %1503 = vmatpush1.msra.mxu0 0.0
    %1504 = vmatprep.subr.mxu0 0.0
    %1505 = vmatpush1.msra.mxu0 0.0
    %1506 = vmatprep.subr.mxu0 0.0
    %1507 = vmatpush1.msra.mxu0 0.0
    %1508 = vmatprep.subr.mxu0 0.0
    %1509 = vmatpush1.msra.mxu0 0.0
    %1510 = vmatprep.subr.mxu0 0.0
    %1511 = vmatpush1.msra.mxu0 0.0
    %1512 = vmatprep.subr.mxu0 0.0
    %1513 = vmatpush1.msra.mxu0 0.0
    %1514 = vmatprep.subr.mxu0 0.0
    %1515 = vmatpush1.msra.mxu0 0.0
    %1516 = vmatprep.subr.mxu0 0.0
    %1517 = vmatpush1.msra.mxu0 0.0
    %1518 = vmatprep.subr.mxu0 0.0
    %1519 = vmatpush1.msra.mxu0 0.0
    %1520 = vmatprep.subr.mxu0 0.0
    %1521 = vmatpush1.msra.mxu0 0.0
    %1522 = vmatprep.subr.mxu0 0.0
    %1523 = vmatpush1.msra.mxu0 0.0
    %1524 = vmatprep.subr.mxu0 0.0
    %1525 = vmatpush1.msra.mxu0 0.0
    %1526 = vmatprep.subr.mxu0 0.0
    %1527 = vmatpush1.msra.mxu0 0.0
    %1528 = vmatprep.subr.mxu0 0.0
    %1529 = vmatpush1.msra.mxu0 0.0
    %1530 = vmatprep.subr.mxu0 0.0
    %1531 = vmatpush1.msra.mxu0 0.0
    %1532 = vmatprep.subr.mxu0 0.0
    %1533 = vmatpush1.msra.mxu0 0.0
    %1534 = vmatprep.subr.mxu0 0.0
    %1535 = vmatpush1.msra.mxu0 0.0
    %1536 = vmatprep.subr.mxu0 0.0
    %1537 = vmatpush1.msra.mxu0 0.0
    %1538 = vmatprep.subr.mxu0 0.0
    %1539 = vmatpush1.msra.mxu0 0.0
    %1540 = vmatprep.subr.mxu0 0.0
    %1541 = vmatpush1.msra.mxu0 0.0
    %1542 = vmatprep.subr.mxu0 0.0
    %1543 = vmatpush1.msra.mxu0 0.0
    %1544 = vmatprep.subr.mxu0 0.0
    %1545 = vmatpush1.msra.mxu0 0.0
    %1546 = vmatprep.subr.mxu0 0.0
    %1547 = vmatpush1.msra.mxu0 0.0
    %1548 = vmatprep.subr.mxu0 0.0
    %1549 = vmatpush1.msra.mxu0 0.0
    %1550 = vmatprep.subr.mxu0 0.0
    %1551 = vmatpush1.msra.mxu0 0.0
    %1552 = vmatprep.subr.mxu0 0.0
    %1553 = vmatpush1.msra.mxu0 0.0
    %1554 = vmatprep.mubr.f32.mxu0 0.0
    %1555 = vmatmul.mubr.f32.gmra.mrb[0].mxu0 %v1488
    %v1556 = vpop.f32.mrb[0].mxu0
    %v1557 = vadd.f32 0.0, %v1556
    %v1558 = vpop.f32.mrb[0].mxu0
    %1559 = vdwg.mxu0
    %v1560 = vadd.f32 %v1156, %v1557
    %v1561 = vxor.u32 %v1560, 2147483648
    %v1562 = vmul.f32 %v1561, 1.442695
    %v1563 = vpow.pop %v1562
    %v1564 = vadd.f32 %v1563, 1.0
    %v1565 = vrcp.pop %v1564
    %v1566 = vmul.f32 1.0, %v1565
    %v1567 = vtanh.pop %v1560
    %v1568 = vmul.f32 %v1566, %v1478
    %1570 = vrot.lane.b32.xlu0 %v1567, 32
    %v1571 = vpop.permute.xlu0 %1570
    %v1573 = vmul.f32 %v1566, %v1571
    %1575 = vrot.lane.b32.xlu0 %v1573, 32
    %v1576 = vpop.permute.xlu0 %1575
    %v1578 = vadd.f32 %v1568, %v1576
    %v1579 = vtanh.pop %v1578
    %1581 = vrot.lane.b32.xlu0 %v1579, 32
    %v1582 = vpop.permute.xlu0 %1581
    %v1584 = vmul.f32 %v1566, %v1582
    %1586 = vrot.lane.b32.xlu0 %v1584, 64
    %v1587 = vpop.permute.xlu0 %1586
    %v1588 = vsel %vm242, %v1587, 0
    %1590 = vmatprep.subr.mxu0 0.0
    %1591 = vmatpush1.msra.mxu0 %v1060
    %1592 = vmatprep.subr.mxu0 0.0
    %1593 = vmatpush1.msra.mxu0 %v1061
    %1594 = vmatprep.subr.mxu0 0.0
    %1595 = vmatpush1.msra.mxu0 %v1062
    %1596 = vmatprep.subr.mxu0 0.0
    %1597 = vmatpush1.msra.mxu0 %v1063
    %1598 = vmatprep.subr.mxu0 0.0
    %1599 = vmatpush1.msra.mxu0 0.0
    %1600 = vmatprep.subr.mxu0 0.0
    %1601 = vmatpush1.msra.mxu0 0.0
    %1602 = vmatprep.subr.mxu0 0.0
    %1603 = vmatpush1.msra.mxu0 0.0
    %1604 = vmatprep.subr.mxu0 0.0
    %1605 = vmatpush1.msra.mxu0 0.0
    %1606 = vmatprep.subr.mxu0 0.0
    %1607 = vmatpush1.msra.mxu0 0.0
    %1608 = vmatprep.subr.mxu0 0.0
    %1609 = vmatpush1.msra.mxu0 0.0
    %1610 = vmatprep.subr.mxu0 0.0
    %1611 = vmatpush1.msra.mxu0 0.0
    %1612 = vmatprep.subr.mxu0 0.0
    %1613 = vmatpush1.msra.mxu0 0.0
    %1614 = vmatprep.subr.mxu0 0.0
    %1615 = vmatpush1.msra.mxu0 0.0
    %1616 = vmatprep.subr.mxu0 0.0
    %1617 = vmatpush1.msra.mxu0 0.0
    %1618 = vmatprep.subr.mxu0 0.0
    %1619 = vmatpush1.msra.mxu0 0.0
    %1620 = vmatprep.subr.mxu0 0.0
    %1621 = vmatpush1.msra.mxu0 0.0
    %1622 = vmatprep.subr.mxu0 0.0
    %1623 = vmatpush1.msra.mxu0 0.0
    %1624 = vmatprep.subr.mxu0 0.0
    %1625 = vmatpush1.msra.mxu0 0.0
    %1626 = vmatprep.subr.mxu0 0.0
    %1627 = vmatpush1.msra.mxu0 0.0
    %1628 = vmatprep.subr.mxu0 0.0
    %1629 = vmatpush1.msra.mxu0 0.0
    %1630 = vmatprep.subr.mxu0 0.0
    %1631 = vmatpush1.msra.mxu0 0.0
    %1632 = vmatprep.subr.mxu0 0.0
    %1633 = vmatpush1.msra.mxu0 0.0
    %1634 = vmatprep.subr.mxu0 0.0
    %1635 = vmatpush1.msra.mxu0 0.0
    %1636 = vmatprep.subr.mxu0 0.0
    %1637 = vmatpush1.msra.mxu0 0.0
    %1638 = vmatprep.subr.mxu0 0.0
    %1639 = vmatpush1.msra.mxu0 0.0
    %1640 = vmatprep.subr.mxu0 0.0
    %1641 = vmatpush1.msra.mxu0 0.0
    %1642 = vmatprep.subr.mxu0 0.0
    %1643 = vmatpush1.msra.mxu0 0.0
    %1644 = vmatprep.subr.mxu0 0.0
    %1645 = vmatpush1.msra.mxu0 0.0
    %1646 = vmatprep.subr.mxu0 0.0
    %1647 = vmatpush1.msra.mxu0 0.0
    %1648 = vmatprep.subr.mxu0 0.0
    %1649 = vmatpush1.msra.mxu0 0.0
    %1650 = vmatprep.subr.mxu0 0.0
    %1651 = vmatpush1.msra.mxu0 0.0
    %1652 = vmatprep.subr.mxu0 0.0
    %1653 = vmatpush1.msra.mxu0 0.0
    %1654 = vmatprep.mubr.f32.mxu0 0.0
    %1655 = vmatmul.mubr.f32.gmra.mrb[0].mxu0 %v1588
    %v1656 = vpop.f32.mrb[0].mxu0
    %v1657 = vadd.f32 0.0, %v1656
    %v1658 = vpop.f32.mrb[0].mxu0
    %1659 = vdwg.mxu0
    %v1660 = vadd.f32 %v1161, %v1657
    %v1661 = vxor.u32 %v1660, 2147483648
    %v1662 = vmul.f32 %v1661, 1.442695
    %v1663 = vpow.pop %v1662
    %v1664 = vadd.f32 %v1663, 1.0
    %v1665 = vrcp.pop %v1664
    %v1666 = vmul.f32 1.0, %v1665
    %v1667 = vtanh.pop %v1660
    %v1668 = vmul.f32 %v1666, %v1578
    %1670 = vrot.lane.b32.xlu0 %v1667, 32
    %v1671 = vpop.permute.xlu0 %1670
    %v1673 = vmul.f32 %v1666, %v1671
    %1675 = vrot.lane.b32.xlu0 %v1673, 32
    %v1676 = vpop.permute.xlu0 %1675
    %v1678 = vadd.f32 %v1668, %v1676
    %v1679 = vtanh.pop %v1678
    %1681 = vrot.lane.b32.xlu0 %v1679, 32
    %v1682 = vpop.permute.xlu0 %1681
    %v1684 = vmul.f32 %v1666, %v1682
    %1686 = vrot.lane.b32.xlu0 %v1684, 64
    %v1687 = vpop.permute.xlu0 %1686
    %v1688 = vsel %vm242, %v1687, 0
    %1690 = vmatprep.subr.mxu0 0.0
    %1691 = vmatpush1.msra.mxu0 %v1060
    %1692 = vmatprep.subr.mxu0 0.0
    %1693 = vmatpush1.msra.mxu0 %v1061
    %1694 = vmatprep.subr.mxu0 0.0
    %1695 = vmatpush1.msra.mxu0 %v1062
    %1696 = vmatprep.subr.mxu0 0.0
    %1697 = vmatpush1.msra.mxu0 %v1063
    %1698 = vmatprep.subr.mxu0 0.0
    %1699 = vmatpush1.msra.mxu0 0.0
    %1700 = vmatprep.subr.mxu0 0.0
    %1701 = vmatpush1.msra.mxu0 0.0
    %1702 = vmatprep.subr.mxu0 0.0
    %1703 = vmatpush1.msra.mxu0 0.0
    %1704 = vmatprep.subr.mxu0 0.0
    %1705 = vmatpush1.msra.mxu0 0.0
    %1706 = vmatprep.subr.mxu0 0.0
    %1707 = vmatpush1.msra.mxu0 0.0
    %1708 = vmatprep.subr.mxu0 0.0
    %1709 = vmatpush1.msra.mxu0 0.0
    %1710 = vmatprep.subr.mxu0 0.0
    %1711 = vmatpush1.msra.mxu0 0.0
    %1712 = vmatprep.subr.mxu0 0.0
    %1713 = vmatpush1.msra.mxu0 0.0
    %1714 = vmatprep.subr.mxu0 0.0
    %1715 = vmatpush1.msra.mxu0 0.0
    %1716 = vmatprep.subr.mxu0 0.0
    %1717 = vmatpush1.msra.mxu0 0.0
    %1718 = vmatprep.subr.mxu0 0.0
    %1719 = vmatpush1.msra.mxu0 0.0
    %1720 = vmatprep.subr.mxu0 0.0
    %1721 = vmatpush1.msra.mxu0 0.0
    %1722 = vmatprep.subr.mxu0 0.0
    %1723 = vmatpush1.msra.mxu0 0.0
    %1724 = vmatprep.subr.mxu0 0.0
    %1725 = vmatpush1.msra.mxu0 0.0
    %1726 = vmatprep.subr.mxu0 0.0
    %1727 = vmatpush1.msra.mxu0 0.0
    %1728 = vmatprep.subr.mxu0 0.0
    %1729 = vmatpush1.msra.mxu0 0.0
    %1730 = vmatprep.subr.mxu0 0.0
    %1731 = vmatpush1.msra.mxu0 0.0
    %1732 = vmatprep.subr.mxu0 0.0
    %1733 = vmatpush1.msra.mxu0 0.0
    %1734 = vmatprep.subr.mxu0 0.0
    %1735 = vmatpush1.msra.mxu0 0.0
    %1736 = vmatprep.subr.mxu0 0.0
    %1737 = vmatpush1.msra.mxu0 0.0
    %1738 = vmatprep.subr.mxu0 0.0
    %1739 = vmatpush1.msra.mxu0 0.0
    %1740 = vmatprep.subr.mxu0 0.0
    %1741 = vmatpush1.msra.mxu0 0.0
    %1742 = vmatprep.subr.mxu0 0.0
    %1743 = vmatpush1.msra.mxu0 0.0
    %1744 = vmatprep.subr.mxu0 0.0
    %1745 = vmatpush1.msra.mxu0 0.0
    %1746 = vmatprep.subr.mxu0 0.0
    %1747 = vmatpush1.msra.mxu0 0.0
    %1748 = vmatprep.subr.mxu0 0.0
    %1749 = vmatpush1.msra.mxu0 0.0
    %1750 = vmatprep.subr.mxu0 0.0
    %1751 = vmatpush1.msra.mxu0 0.0
    %1752 = vmatprep.subr.mxu0 0.0
    %1753 = vmatpush1.msra.mxu0 0.0
    %1754 = vmatprep.mubr.f32.mxu0 0.0
    %1755 = vmatmul.mubr.f32.gmra.mrb[0].mxu0 %v1688
    %v1756 = vpop.f32.mrb[0].mxu0
    %v1757 = vadd.f32 0.0, %v1756
    %v1758 = vpop.f32.mrb[0].mxu0
    %1759 = vdwg.mxu0
    %v1760 = vadd.f32 %v1166, %v1757
    %v1761 = vxor.u32 %v1760, 2147483648
    %v1762 = vmul.f32 %v1761, 1.442695
    %v1763 = vpow.pop %v1762
    %v1764 = vadd.f32 %v1763, 1.0
    %v1765 = vrcp.pop %v1764
    %v1766 = vmul.f32 1.0, %v1765
    %v1767 = vtanh.pop %v1760
    %v1768 = vmul.f32 %v1766, %v1678
    %1770 = vrot.lane.b32.xlu0 %v1767, 32
    %v1771 = vpop.permute.xlu0 %1770
    %v1773 = vmul.f32 %v1766, %v1771
    %1775 = vrot.lane.b32.xlu0 %v1773, 32
    %v1776 = vpop.permute.xlu0 %1775
    %v1778 = vadd.f32 %v1768, %v1776
    %v1779 = vtanh.pop %v1778
    %1781 = vrot.lane.b32.xlu0 %v1779, 32
    %v1782 = vpop.permute.xlu0 %1781
    %v1784 = vmul.f32 %v1766, %v1782
    %1786 = vrot.lane.b32.xlu0 %v1784, 64
    %v1787 = vpop.permute.xlu0 %1786
    %v1788 = vsel %vm242, %v1787, 0
    %1790 = vmatprep.subr.mxu0 0.0
    %1791 = vmatpush1.msra.mxu0 %v1060
    %1792 = vmatprep.subr.mxu0 0.0
    %1793 = vmatpush1.msra.mxu0 %v1061
    %1794 = vmatprep.subr.mxu0 0.0
    %1795 = vmatpush1.msra.mxu0 %v1062
    %1796 = vmatprep.subr.mxu0 0.0
    %1797 = vmatpush1.msra.mxu0 %v1063
    %1798 = vmatprep.subr.mxu0 0.0
    %1799 = vmatpush1.msra.mxu0 0.0
    %1800 = vmatprep.subr.mxu0 0.0
    %1801 = vmatpush1.msra.mxu0 0.0
    %1802 = vmatprep.subr.mxu0 0.0
    %1803 = vmatpush1.msra.mxu0 0.0
    %1804 = vmatprep.subr.mxu0 0.0
    %1805 = vmatpush1.msra.mxu0 0.0
    %1806 = vmatprep.subr.mxu0 0.0
    %1807 = vmatpush1.msra.mxu0 0.0
    %1808 = vmatprep.subr.mxu0 0.0
    %1809 = vmatpush1.msra.mxu0 0.0
    %1810 = vmatprep.subr.mxu0 0.0
    %1811 = vmatpush1.msra.mxu0 0.0
    %1812 = vmatprep.subr.mxu0 0.0
    %1813 = vmatpush1.msra.mxu0 0.0
    %1814 = vmatprep.subr.mxu0 0.0
    %1815 = vmatpush1.msra.mxu0 0.0
    %1816 = vmatprep.subr.mxu0 0.0
    %1817 = vmatpush1.msra.mxu0 0.0
    %1818 = vmatprep.subr.mxu0 0.0
    %1819 = vmatpush1.msra.mxu0 0.0
    %1820 = vmatprep.subr.mxu0 0.0
    %1821 = vmatpush1.msra.mxu0 0.0
    %1822 = vmatprep.subr.mxu0 0.0
    %1823 = vmatpush1.msra.mxu0 0.0
    %1824 = vmatprep.subr.mxu0 0.0
    %1825 = vmatpush1.msra.mxu0 0.0
    %1826 = vmatprep.subr.mxu0 0.0
    %1827 = vmatpush1.msra.mxu0 0.0
    %1828 = vmatprep.subr.mxu0 0.0
    %1829 = vmatpush1.msra.mxu0 0.0
    %1830 = vmatprep.subr.mxu0 0.0
    %1831 = vmatpush1.msra.mxu0 0.0
    %1832 = vmatprep.subr.mxu0 0.0
    %1833 = vmatpush1.msra.mxu0 0.0
    %1834 = vmatprep.subr.mxu0 0.0
    %1835 = vmatpush1.msra.mxu0 0.0
    %1836 = vmatprep.subr.mxu0 0.0
    %1837 = vmatpush1.msra.mxu0 0.0
    %1838 = vmatprep.subr.mxu0 0.0
    %1839 = vmatpush1.msra.mxu0 0.0
    %1840 = vmatprep.subr.mxu0 0.0
    %1841 = vmatpush1.msra.mxu0 0.0
    %1842 = vmatprep.subr.mxu0 0.0
    %1843 = vmatpush1.msra.mxu0 0.0
    %1844 = vmatprep.subr.mxu0 0.0
    %1845 = vmatpush1.msra.mxu0 0.0
    %1846 = vmatprep.subr.mxu0 0.0
    %1847 = vmatpush1.msra.mxu0 0.0
    %1848 = vmatprep.subr.mxu0 0.0
    %1849 = vmatpush1.msra.mxu0 0.0
    %1850 = vmatprep.subr.mxu0 0.0
    %1851 = vmatpush1.msra.mxu0 0.0
    %1852 = vmatprep.subr.mxu0 0.0
    %1853 = vmatpush1.msra.mxu0 0.0
    %1854 = vmatprep.mubr.f32.mxu0 0.0
    %1855 = vmatmul.mubr.f32.gmra.mrb[0].mxu0 %v1788
    %v1856 = vpop.f32.mrb[0].mxu0
    %v1857 = vadd.f32 0.0, %v1856
    %v1858 = vpop.f32.mrb[0].mxu0
    %1859 = vdwg.mxu0
    %v1860 = vadd.f32 %v1171, %v1857
    %v1861 = vxor.u32 %v1860, 2147483648
    %v1862 = vmul.f32 %v1861, 1.442695
    %v1863 = vpow.pop %v1862
    %v1864 = vadd.f32 %v1863, 1.0
    %v1865 = vrcp.pop %v1864
    %v1866 = vmul.f32 1.0, %v1865
    %v1867 = vtanh.pop %v1860
    %v1868 = vmul.f32 %v1866, %v1778
    %1870 = vrot.lane.b32.xlu0 %v1867, 32
    %v1871 = vpop.permute.xlu0 %1870
    %v1873 = vmul.f32 %v1866, %v1871
    %1875 = vrot.lane.b32.xlu0 %v1873, 32
    %v1876 = vpop.permute.xlu0 %1875
    %v1878 = vadd.f32 %v1868, %v1876
    %v1879 = vtanh.pop %v1878
    %1881 = vrot.lane.b32.xlu0 %v1879, 32
    %v1882 = vpop.permute.xlu0 %1881
    %v1884 = vmul.f32 %v1866, %v1882
    %1886 = vrot.lane.b32.xlu0 %v1884, 64
    %v1887 = vpop.permute.xlu0 %1886
    %v1888 = vsel %vm242, %v1887, 0
    %1890 = vmatprep.subr.mxu0 0.0
    %1891 = vmatpush1.msra.mxu0 %v1060
    %1892 = vmatprep.subr.mxu0 0.0
    %1893 = vmatpush1.msra.mxu0 %v1061
    %1894 = vmatprep.subr.mxu0 0.0
    %1895 = vmatpush1.msra.mxu0 %v1062
    %1896 = vmatprep.subr.mxu0 0.0
    %1897 = vmatpush1.msra.mxu0 %v1063
    %1898 = vmatprep.subr.mxu0 0.0
    %1899 = vmatpush1.msra.mxu0 0.0
    %1900 = vmatprep.subr.mxu0 0.0
    %1901 = vmatpush1.msra.mxu0 0.0
    %1902 = vmatprep.subr.mxu0 0.0
    %1903 = vmatpush1.msra.mxu0 0.0
    %1904 = vmatprep.subr.mxu0 0.0
    %1905 = vmatpush1.msra.mxu0 0.0
    %1906 = vmatprep.subr.mxu0 0.0
    %1907 = vmatpush1.msra.mxu0 0.0
    %1908 = vmatprep.subr.mxu0 0.0
    %1909 = vmatpush1.msra.mxu0 0.0
    %1910 = vmatprep.subr.mxu0 0.0
    %1911 = vmatpush1.msra.mxu0 0.0
    %1912 = vmatprep.subr.mxu0 0.0
    %1913 = vmatpush1.msra.mxu0 0.0
    %1914 = vmatprep.subr.mxu0 0.0
    %1915 = vmatpush1.msra.mxu0 0.0
    %1916 = vmatprep.subr.mxu0 0.0
    %1917 = vmatpush1.msra.mxu0 0.0
    %1918 = vmatprep.subr.mxu0 0.0
    %1919 = vmatpush1.msra.mxu0 0.0
    %1920 = vmatprep.subr.mxu0 0.0
    %1921 = vmatpush1.msra.mxu0 0.0
    %1922 = vmatprep.subr.mxu0 0.0
    %1923 = vmatpush1.msra.mxu0 0.0
    %1924 = vmatprep.subr.mxu0 0.0
    %1925 = vmatpush1.msra.mxu0 0.0
    %1926 = vmatprep.subr.mxu0 0.0
    %1927 = vmatpush1.msra.mxu0 0.0
    %1928 = vmatprep.subr.mxu0 0.0
    %1929 = vmatpush1.msra.mxu0 0.0
    %1930 = vmatprep.subr.mxu0 0.0
    %1931 = vmatpush1.msra.mxu0 0.0
    %1932 = vmatprep.subr.mxu0 0.0
    %1933 = vmatpush1.msra.mxu0 0.0
    %1934 = vmatprep.subr.mxu0 0.0
    %1935 = vmatpush1.msra.mxu0 0.0
    %1936 = vmatprep.subr.mxu0 0.0
    %1937 = vmatpush1.msra.mxu0 0.0
    %1938 = vmatprep.subr.mxu0 0.0
    %1939 = vmatpush1.msra.mxu0 0.0
    %1940 = vmatprep.subr.mxu0 0.0
    %1941 = vmatpush1.msra.mxu0 0.0
    %1942 = vmatprep.subr.mxu0 0.0
    %1943 = vmatpush1.msra.mxu0 0.0
    %1944 = vmatprep.subr.mxu0 0.0
    %1945 = vmatpush1.msra.mxu0 0.0
    %1946 = vmatprep.subr.mxu0 0.0
    %1947 = vmatpush1.msra.mxu0 0.0
    %1948 = vmatprep.subr.mxu0 0.0
    %1949 = vmatpush1.msra.mxu0 0.0
    %1950 = vmatprep.subr.mxu0 0.0
    %1951 = vmatpush1.msra.mxu0 0.0
    %1952 = vmatprep.subr.mxu0 0.0
    %1953 = vmatpush1.msra.mxu0 0.0
    %1954 = vmatprep.mubr.f32.mxu0 0.0
    %1955 = vmatmul.mubr.f32.gmra.mrb[0].mxu0 %v1888
    %v1956 = vpop.f32.mrb[0].mxu0
    %v1957 = vadd.f32 0.0, %v1956
    %v1958 = vpop.f32.mrb[0].mxu0
    %1959 = vdwg.mxu0
    %v1960 = vadd.f32 %v1176, %v1957
    %v1961 = vxor.u32 %v1960, 2147483648
    %v1962 = vmul.f32 %v1961, 1.442695
    %v1963 = vpow.pop %v1962
    %v1964 = vadd.f32 %v1963, 1.0
    %v1965 = vrcp.pop %v1964
    %v1966 = vmul.f32 1.0, %v1965
    %v1967 = vtanh.pop %v1960
    %v1968 = vmul.f32 %v1966, %v1878
    %1970 = vrot.lane.b32.xlu0 %v1967, 32
    %v1971 = vpop.permute.xlu0 %1970
    %v1973 = vmul.f32 %v1966, %v1971
    %1975 = vrot.lane.b32.xlu0 %v1973, 32
    %v1976 = vpop.permute.xlu0 %1975
    %v1978 = vadd.f32 %v1968, %v1976
    %v1979 = vtanh.pop %v1978
    %1981 = vrot.lane.b32.xlu0 %v1979, 32
    %v1982 = vpop.permute.xlu0 %1981
    %v1984 = vmul.f32 %v1966, %v1982
    %1986 = vrot.lane.b32.xlu0 %v1984, 64
    %v1987 = vpop.permute.xlu0 %1986
    %s1989 = scalar_lea.vmem [#allocation11], 8
    %1990 = vst.msk [vmem:[%s1989] sm:$0xff] %vm242, %v1987
    %1992 = vrot.lane.b32.xlu0 %v1978, 96
    %v1993 = vpop.permute.xlu0 %1992
    %s1995 = scalar_lea.vmem [#allocation13], 8
    %1996 = vst.msk [vmem:[%s1995] sm:$0xff] %vm242, %v1993
    %v1997 = vld [vmem:[%s7] sm:$0xff]
    %v1998 = vld [vmem:[%s7 + $0x8] sm:$0xff]
    %v1999 = vld [vmem:[%s7 + $0x10] sm:$0xff]
    %v2000 = vld [vmem:[%s7 + $0x18] sm:$0xff]
    %v2001 = vld [vmem:[%s8] sm:$0x1]
    %v2003 = vlaneseq
    %v2004 = vshrl.u32 %v2003, 7
    %v2005 = vsub.s32 0, %v2004
    %v2006 = vrot.slane %v2001, %v2005
    %v2008 = vsel %vm242, %v1987, 0
    %2010 = vmatprep.subr.mxu0 0.0
    %2011 = vmatpush1.msra.mxu0 %v1997
    %2012 = vmatprep.subr.mxu0 0.0
    %2013 = vmatpush1.msra.mxu0 %v1998
    %2014 = vmatprep.subr.mxu0 0.0
    %2015 = vmatpush1.msra.mxu0 %v1999
    %2016 = vmatprep.subr.mxu0 0.0
    %2017 = vmatpush1.msra.mxu0 %v2000
    %2018 = vmatprep.subr.mxu0 0.0
    %2019 = vmatpush1.msra.mxu0 0.0
    %2020 = vmatprep.subr.mxu0 0.0
    %2021 = vmatpush1.msra.mxu0 0.0
    %2022 = vmatprep.subr.mxu0 0.0
    %2023 = vmatpush1.msra.mxu0 0.0
    %2024 = vmatprep.subr.mxu0 0.0
    %2025 = vmatpush1.msra.mxu0 0.0
    %2026 = vmatprep.subr.mxu0 0.0
    %2027 = vmatpush1.msra.mxu0 0.0
    %2028 = vmatprep.subr.mxu0 0.0
    %2029 = vmatpush1.msra.mxu0 0.0
    %2030 = vmatprep.subr.mxu0 0.0
    %2031 = vmatpush1.msra.mxu0 0.0
    %2032 = vmatprep.subr.mxu0 0.0
    %2033 = vmatpush1.msra.mxu0 0.0
    %2034 = vmatprep.subr.mxu0 0.0
    %2035 = vmatpush1.msra.mxu0 0.0
    %2036 = vmatprep.subr.mxu0 0.0
    %2037 = vmatpush1.msra.mxu0 0.0
    %2038 = vmatprep.subr.mxu0 0.0
    %2039 = vmatpush1.msra.mxu0 0.0
    %2040 = vmatprep.subr.mxu0 0.0
    %2041 = vmatpush1.msra.mxu0 0.0
    %2042 = vmatprep.subr.mxu0 0.0
    %2043 = vmatpush1.msra.mxu0 0.0
    %2044 = vmatprep.subr.mxu0 0.0
    %2045 = vmatpush1.msra.mxu0 0.0
    %2046 = vmatprep.subr.mxu0 0.0
    %2047 = vmatpush1.msra.mxu0 0.0
    %2048 = vmatprep.subr.mxu0 0.0
    %2049 = vmatpush1.msra.mxu0 0.0
    %2050 = vmatprep.subr.mxu0 0.0
    %2051 = vmatpush1.msra.mxu0 0.0
    %2052 = vmatprep.subr.mxu0 0.0
    %2053 = vmatpush1.msra.mxu0 0.0
    %2054 = vmatprep.subr.mxu0 0.0
    %2055 = vmatpush1.msra.mxu0 0.0
    %2056 = vmatprep.subr.mxu0 0.0
    %2057 = vmatpush1.msra.mxu0 0.0
    %2058 = vmatprep.subr.mxu0 0.0
    %2059 = vmatpush1.msra.mxu0 0.0
    %2060 = vmatprep.subr.mxu0 0.0
    %2061 = vmatpush1.msra.mxu0 0.0
    %2062 = vmatprep.subr.mxu0 0.0
    %2063 = vmatpush1.msra.mxu0 0.0
    %2064 = vmatprep.subr.mxu0 0.0
    %2065 = vmatpush1.msra.mxu0 0.0
    %2066 = vmatprep.subr.mxu0 0.0
    %2067 = vmatpush1.msra.mxu0 0.0
    %2068 = vmatprep.subr.mxu0 0.0
    %2069 = vmatpush1.msra.mxu0 0.0
    %2070 = vmatprep.subr.mxu0 0.0
    %2071 = vmatpush1.msra.mxu0 0.0
    %2072 = vmatprep.subr.mxu0 0.0
    %2073 = vmatpush1.msra.mxu0 0.0
    %2074 = vmatprep.mubr.f32.mxu0 0.0
    %2075 = vmatmul.mubr.f32.gmra.mrb[0].mxu0 %v2008
    %v2076 = vpop.f32.mrb[0].mxu0
    %v2077 = vadd.f32 %v2006, %v2076
    %v2078 = vpop.f32.mrb[0].mxu0
    %2079 = vdwg.mxu0
    %2080 = vst [vmem:[#allocation10] sm:$0xff] %v2077
    // Predicated region
    $region54: #{tpu_custom_call.1} parent=1 // pred_check
      _
    $region55: #{tpu_custom_call.1} parent=1 // pred_check_branch
      %2082 = sbr.rel (0) target = $region57
    $region56: #{tpu_custom_call.1} parent=1 // pred_region
      %s2084 = ssub.s32 128, 128
      %2085 = vsyncadd [#allocation4], %s2084
      %s2087 = sshll.u32 [#allocation10], 4
      %s2088 = int_to_ptr.vmem [resolvable:$true] %s2087
      %2090 = dma.vmem_to_hbm [thread:$0]  %s2088, 128, %s9, [#allocation4]
    $region57: #{tpu_custom_call.1} parent=1 // pred_fallthru
      _
    // Predicated region
    $region58: #{tpu_custom_call.1} parent=1 // pred_check
      _
    $region59: #{tpu_custom_call.1} parent=1 // pred_check_branch
      %2092 = sbr.rel (0) target = $region61
    $region60: #{tpu_custom_call.1} parent=1 // pred_region
      %s2094 = ssub.s32 256, 256
      %2095 = vsyncadd [#allocation12], %s2094
      %s2096 = sshll.u32 [#allocation11], 4
      %s2097 = int_to_ptr.vmem [resolvable:$true] %s2096
      %2102 = dma.vmem_to_hbm [thread:$0]  %s2097, 256, %s10, [#allocation12], 128, 128, 8
    $region61: #{tpu_custom_call.1} parent=1 // pred_fallthru
      _
    // Predicated region
    $region62: #{tpu_custom_call.1} parent=1 // pred_check
      _
    $region63: #{tpu_custom_call.1} parent=1 // pred_check_branch
      %2104 = sbr.rel (0) target = $region65
    $region64: #{tpu_custom_call.1} parent=1 // pred_region
      %s2106 = ssub.s32 256, 256
      %2107 = vsyncadd [#allocation12], %s2106
      %s2108 = sshll.u32 [#allocation13], 4
      %s2109 = int_to_ptr.vmem [resolvable:$true] %s2108
      %2114 = dma.vmem_to_hbm [thread:$0]  %s2109, 256, %s11, [#allocation12], 128, 128, 8
    $region65: #{tpu_custom_call.1} parent=1 // pred_fallthru
      _
    // Predicated region
    $region66: #{tpu_custom_call.1} parent=1 // pred_check
      _
    $region67: #{tpu_custom_call.1} parent=1 // pred_check_branch
      %2116 = sbr.rel (0) target = $region69
    $region68: #{tpu_custom_call.1} parent=1 // pred_region
      %2117 = dma.done [#allocation4], 128
    $region69: #{tpu_custom_call.1} parent=1 // pred_fallthru
      _
    // Predicated region
    $region70: #{tpu_custom_call.1} parent=1 // pred_check
      _
    $region71: #{tpu_custom_call.1} parent=1 // pred_check_branch
      %2119 = sbr.rel (0) target = $region73
    $region72: #{tpu_custom_call.1} parent=1 // pred_region
      %2120 = dma.done [#allocation12], 256
    $region73: #{tpu_custom_call.1} parent=1 // pred_fallthru
      _
    // Predicated region
    $region74: #{tpu_custom_call.1} parent=1 // pred_check
      _
    $region75: #{tpu_custom_call.1} parent=1 // pred_check_branch
      %2122 = sbr.rel (0) target = $region77
    $region76: #{tpu_custom_call.1} parent=1 // pred_region
      %2123 = dma.done [#allocation12], 256
    $region77: #{tpu_custom_call.1} parent=1 // pred_fallthru
      _
    %2124 = vsyncpa [#allocation3], 1
    %2125 = vsyncpa [#allocation6], 1
    %2126 = vsyncpa [#allocation9], 1
    %2127 = vsyncpa [#allocation4], 1
    %2128 = vsyncpa [#allocation12], 1

</llo_original>
